<compile_context>
chip_gen: v6e
topology: v6e:2x2x1
jax: 0.10.0
libtpu: 0.0.40
codegen_flags: <defaults>
</compile_context>

<pallas_src>
import functools
import math

import jax
import jax.numpy as jnp
from jax import lax
from jax.experimental import pallas as pl
from jax.experimental.pallas import tpu as pltpu


# ----------------------------------------------------------------------------
# Tiled linear kernel: y = x @ w + b
# ----------------------------------------------------------------------------
def _linear_kernel(x_ref, w_ref, b_ref, o_ref, acc_ref):
    @pl.when(pl.program_id(2) == 0)
    def _():
        acc_ref[...] = jnp.zeros_like(acc_ref)

    acc_ref[...] += jnp.dot(x_ref[...], w_ref[...],
                            preferred_element_type=jnp.float32)

    @pl.when(pl.program_id(2) == pl.num_programs(2) - 1)
    def _():
        o_ref[...] = (acc_ref[...] + b_ref[...].astype(jnp.float32)
                      ).astype(o_ref.dtype)


def _pick_tile(dim, target, align):
    """Largest multiple of `align` that divides `dim` and is <= target,
    else the full dim (full-extent blocks are always legal)."""
    if dim <= target:
        return dim
    t = (target // align) * align
    while t >= align:
        if dim % t == 0:
            return t
        t -= align
    return dim


def pallas_linear(x, w, b, *, tm_target=256, tn_target=256, tk_target=512):
    """y = x @ w + b.  w stored transposed: (Cin, Cout).  Tiled + pipelined."""
    m, kdim = x.shape
    _, n = w.shape
    tm = _pick_tile(m, tm_target, 8)      # sublane-aligned
    tn = _pick_tile(n, tn_target, 128)    # lane-aligned (or full dim)
    tk = _pick_tile(kdim, tk_target, 128)
    grid = (m // tm, n // tn, kdim // tk)
    return pl.pallas_call(
        _linear_kernel,
        out_shape=jax.ShapeDtypeStruct((m, n), x.dtype),
        grid_spec=pltpu.PrefetchScalarGridSpec(
            num_scalar_prefetch=0,
            grid=grid,
            in_specs=[
                pl.BlockSpec((tm, tk), lambda i, j, kk: (i, kk)),
                pl.BlockSpec((tk, tn), lambda i, j, kk: (kk, j)),
                pl.BlockSpec((1, tn), lambda i, j, kk: (0, j)),
            ],
            out_specs=pl.BlockSpec((tm, tn), lambda i, j, kk: (i, j)),
            scratch_shapes=[pltpu.VMEM((tm, tn), jnp.float32)],
        ),
        compiler_params=pltpu.CompilerParams(
            dimension_semantics=("parallel", "parallel", "arbitrary")),
    )(x, w, b.reshape(1, n))


# ----------------------------------------------------------------------------
# Attention kernel: one batch element per grid step, all heads in-block.
# Input block:  (1, L, 3C)  (fused q|k|v projections, lane-contiguous)
# Output block: (1, L, C)   (heads merged back along lanes)
# ----------------------------------------------------------------------------
def _attention_kernel(qkv_ref, o_ref, *, num_heads, scale):
    e = o_ref.shape[-1]                 # embed dim C
    dh = e // num_heads
    qkv = qkv_ref[0]                    # (L, 3C), loaded once

    # Static per-head lane slices; heads unrolled (num_heads is small/static).
    for h in range(num_heads):
        q = qkv[:, h * dh:(h + 1) * dh] * scale               # (L, Dh)
        k = qkv[:, e + h * dh: e + (h + 1) * dh]              # (L, Dh)
        v = qkv[:, 2 * e + h * dh: 2 * e + (h + 1) * dh]      # (L, Dh)

        # scores = q @ k^T, contracting the last dims directly (no explicit .T)
        s = lax.dot_general(q, k, (((1,), (1,)), ((), ())),
                            preferred_element_type=jnp.float32)  # (L, L)
        m = jnp.max(s, axis=-1, keepdims=True)
        p = jnp.exp(s - m)
        denom = jnp.sum(p, axis=-1, keepdims=True)
        p = p * pl.reciprocal(denom, approx=True)                # EUP, not VALU
        o = jnp.dot(p, v, preferred_element_type=jnp.float32)    # (L, Dh)

        o_ref[0, :, h * dh:(h + 1) * dh] = o.astype(o_ref.dtype)


def pallas_attention(qkv, *, num_heads, scale):
    """qkv: (B, L, 3C) -> (B, L, C); per-batch multi-head attention."""
    b, seq, c3 = qkv.shape
    c = c3 // 3
    kern = functools.partial(_attention_kernel, num_heads=num_heads, scale=scale)
    return pl.pallas_call(
        kern,
        out_shape=jax.ShapeDtypeStruct((b, seq, c), qkv.dtype),
        grid_spec=pltpu.PrefetchScalarGridSpec(
            num_scalar_prefetch=0,
            grid=(b,),
            in_specs=[pl.BlockSpec((1, seq, c3), lambda i: (i, 0, 0))],
            out_specs=pl.BlockSpec((1, seq, c), lambda i: (i, 0, 0)),
        ),
        compiler_params=pltpu.CompilerParams(
            dimension_semantics=("parallel",)),   # keeps both v7x TCs busy (B>=2)
    )(qkv)


# ----------------------------------------------------------------------------
# Module: parameter init + forward
# ----------------------------------------------------------------------------
def init_qkv_attention_params(key, in_channels, out_channels):
    """Deterministic init mirroring the shapes of the PyTorch module.
    All linear weights stored already transposed: (fan_in, fan_out)."""
    c_in, c_out = in_channels, out_channels
    ks = jax.random.split(key, 8)

    def uinit(k, shape, fan_in):
        bound = 1.0 / math.sqrt(fan_in)
        return jax.random.uniform(k, shape, jnp.float32, -bound, bound)

    return {
        # self.qkv = nn.Linear(in_channels, out_channels * 3)
        "qkv_w": uinit(ks[0], (c_in, 3 * c_out), c_in),
        "qkv_b": uinit(ks[1], (3 * c_out,), c_in),
        # nn.MultiheadAttention in_proj (split q/k/v) + bias
        "in_w_q": uinit(ks[2], (c_out, c_out), c_out),
        "in_w_k": uinit(ks[3], (c_out, c_out), c_out),
        "in_w_v": uinit(ks[4], (c_out, c_out), c_out),
        "in_b": uinit(ks[5], (3 * c_out,), c_out),
        # nn.MultiheadAttention out_proj = nn.Linear(E, E)
        "out_w": uinit(ks[6], (c_out, c_out), c_out),
        "out_b": uinit(ks[7], (c_out,), c_out),
    }


def qkv_attention_forward(x, params, num_heads):
    """Forward pass of QKVAttention. x: (B, C, H, W) float32, NCHW."""
    b, c, h, w = x.shape
    seq = h * w
    c_out = params["out_w"].shape[0]
    dh = c_out // num_heads
    assert dh * num_heads == c_out, "num_heads must divide channels"

    # --- Trace-time algebraic fusion: qkv Linear composed with MHA in_proj ---
    # q = (tok @ Wqkv_q + bqkv_q) @ Wq + bq = tok @ (Wqkv_q @ Wq) + (bqkv_q @ Wq + bq)
    bq, bk, bv = jnp.split(params["in_b"], 3)
    w_fused = jnp.concatenate([
        params["qkv_w"][:, 0 * c_out:1 * c_out] @ params["in_w_q"],
        params["qkv_w"][:, 1 * c_out:2 * c_out] @ params["in_w_k"],
        params["qkv_w"][:, 2 * c_out:3 * c_out] @ params["in_w_v"],
    ], axis=1)                                                    # (C_in, 3E)
    b_fused = jnp.concatenate([
        params["qkv_b"][0 * c_out:1 * c_out] @ params["in_w_q"] + bq,
        params["qkv_b"][1 * c_out:2 * c_out] @ params["in_w_k"] + bk,
        params["qkv_b"][2 * c_out:3 * c_out] @ params["in_w_v"] + bv,
    ])                                                            # (3E,)

    # (B, C, H, W) -> (B, L, C) tokens (batch-major internal layout)
    tokens = jnp.transpose(x.reshape(b, c, seq), (0, 2, 1))       # (B, L, C)
    flat = tokens.reshape(b * seq, c)

    # Single fused projection: tokens -> q|k|v (already in-projected)
    qkv = pallas_linear(flat, w_fused, b_fused)                   # (B*L, 3E)
    qkv = qkv.reshape(b, seq, 3 * c_out)

    # Multi-head scaled-dot-product attention (scale folded into q in-kernel)
    o = pallas_attention(qkv, num_heads=num_heads,
                         scale=1.0 / math.sqrt(dh))               # (B, L, E)

    # MHA out-projection
    o = pallas_linear(o.reshape(b * seq, c_out),
                      params["out_w"], params["out_b"])           # (B*L, E)

    # (B, L, E) -> (B, C, H, W)
    o = o.reshape(b, seq, c_out)
    return jnp.transpose(o, (0, 2, 1)).reshape(b, c_out, h, w)


# ----------------------------------------------------------------------------
if __name__ == "__main__":
    B, C, H, W = 2, 32, 8, 8      # in_channels == out_channels == C
    NUM_HEADS = 4

    key = jax.random.PRNGKey(0)
    k_x, k_p = jax.random.split(key)
    x = jax.random.normal(k_x, (B, C, H, W), dtype=jnp.float32)
    params = init_qkv_attention_params(k_p, C, C)

    fwd = jax.jit(functools.partial(qkv_attention_forward, num_heads=NUM_HEADS))
    out = jax.block_until_ready(fwd(x, params))

    assert out.shape == (B, C, H, W), out.shape
    assert jnp.all(jnp.isfinite(out))
    print("KERNEL_OK")
</pallas_src>

<mosaic_0001>
module attributes {stable_mosaic.version = 11 : i64} {
  func.func @_linear_kernel(%arg0: i32, %arg1: i32, %arg2: i32, %arg3: memref<128x32xf32, #tpu.memory_space<vmem>>, %arg4: memref<32x96xf32, #tpu.memory_space<vmem>>, %arg5: memref<1x96xf32, #tpu.memory_space<vmem>>, %arg6: memref<128x96xf32, #tpu.memory_space<vmem>>, %arg7: memref<128x96xf32, #tpu.memory_space<vmem>>) attributes {dimension_semantics = [#tpu.dimension_semantics<parallel>, #tpu.dimension_semantics<parallel>, #tpu.dimension_semantics<arbitrary>], iteration_bounds = array<i64: 1, 1, 1>, scalar_prefetch = 0 : i64, scratch_operands = 1 : i64, tpu.core_type = #tpu.core_type<tc>, window_params = [{transform_indices = @transform_0, window_bounds = array<i64: 128, 32>}, {transform_indices = @transform_1, window_bounds = array<i64: 32, 96>}, {transform_indices = @transform_2, window_bounds = array<i64: 1, 96>}, {transform_indices = @transform_3, window_bounds = array<i64: 128, 96>}]} {
    %c0_i32 = arith.constant 0 : i32
    %0 = arith.cmpi eq, %arg2, %c0_i32 : i32
    %1 = arith.extui %0 : i1 to i32
    %c0_i32_0 = arith.constant 0 : i32
    %2 = arith.cmpi ne, %1, %c0_i32_0 : i32
    scf.if %2 {
      %cst_10 = arith.constant 0.000000e+00 : f32
      %12 = vector.broadcast %cst_10 : f32 to vector<128x96xf32>
      %c0_11 = arith.constant 0 : index
      %c0_12 = arith.constant 0 : index
      %13 = vector.load %arg7[%c0_11, %c0_12] : memref<128x96xf32, #tpu.memory_space<vmem>>, vector<128x96xf32>
      tpu.vector_store %arg7[%c0_11, %c0_12], %12 {strides = array<i32>} : memref<128x96xf32, #tpu.memory_space<vmem>>, vector<128x96xf32>,
    } else {
    }
    %c0 = arith.constant 0 : index
    %c0_1 = arith.constant 0 : index
    %3 = vector.load %arg7[%c0, %c0_1] : memref<128x96xf32, #tpu.memory_space<vmem>>, vector<128x96xf32>
    %c0_2 = arith.constant 0 : index
    %c0_3 = arith.constant 0 : index
    %4 = vector.load %arg3[%c0_2, %c0_3] : memref<128x32xf32, #tpu.memory_space<vmem>>, vector<128x32xf32>
    %c0_4 = arith.constant 0 : index
    %c0_5 = arith.constant 0 : index
    %5 = vector.load %arg4[%c0_4, %c0_5] : memref<32x96xf32, #tpu.memory_space<vmem>>, vector<32x96xf32>
    %cst = arith.constant dense<0.000000e+00> : vector<128x96xf32>
    %6 = tpu.matmul %4, %5, %cst {dimension_numbers = #tpu.dot_dimension_numbers<[1], [0], [0], [1], [0, 0, 1, 1], [], []>} : vector<128x32xf32>, vector<32x96xf32>, vector<128x96xf32> -> vector<128x96xf32>
    %7 = arith.addf %3, %6 : vector<128x96xf32>
    %c0_6 = arith.constant 0 : index
    %c0_7 = arith.constant 0 : index
    %8 = vector.load %arg7[%c0_6, %c0_7] : memref<128x96xf32, #tpu.memory_space<vmem>>, vector<128x96xf32>
    tpu.vector_store %arg7[%c0_6, %c0_7], %7 {strides = array<i32>} : memref<128x96xf32, #tpu.memory_space<vmem>>, vector<128x96xf32>,
    %c0_i32_8 = arith.constant 0 : i32
    %9 = arith.cmpi eq, %arg2, %c0_i32_8 : i32
    %10 = arith.extui %9 : i1 to i32
    %c0_i32_9 = arith.constant 0 : i32
    %11 = arith.cmpi ne, %10, %c0_i32_9 : i32
    scf.if %11 {
      %c0_10 = arith.constant 0 : index
      %c0_11 = arith.constant 0 : index
      %12 = vector.load %arg7[%c0_10, %c0_11] : memref<128x96xf32, #tpu.memory_space<vmem>>, vector<128x96xf32>
      %c0_12 = arith.constant 0 : index
      %c0_13 = arith.constant 0 : index
      %13 = vector.load %arg5[%c0_12, %c0_13] : memref<1x96xf32, #tpu.memory_space<vmem>>, vector<1x96xf32>
      %14 = vector.broadcast %13 : vector<1x96xf32> to vector<128x96xf32>
      %15 = arith.addf %12, %14 : vector<128x96xf32>
      %c0_14 = arith.constant 0 : index
      %c0_15 = arith.constant 0 : index
      %16 = vector.load %arg6[%c0_14, %c0_15] : memref<128x96xf32, #tpu.memory_space<vmem>>, vector<128x96xf32>
      tpu.vector_store %arg6[%c0_14, %c0_15], %15 {strides = array<i32>} : memref<128x96xf32, #tpu.memory_space<vmem>>, vector<128x96xf32>,
    } else {
    }
    return
  }
  func.func @transform_0(%arg0: i32, %arg1: i32, %arg2: i32) -> (i32, i32) {
    %c0_i32 = arith.constant 0 : i32
    return %arg0, %arg2 : i32, i32
  }
  func.func @transform_1(%arg0: i32, %arg1: i32, %arg2: i32) -> (i32, i32) {
    %c0_i32 = arith.constant 0 : i32
    return %arg2, %arg1 : i32, i32
  }
  func.func @transform_2(%arg0: i32, %arg1: i32, %arg2: i32) -> (i32, i32) {
    %c0_i32 = arith.constant 0 : i32
    %c0_i32_0 = arith.constant 0 : i32
    return %c0_i32, %arg1 : i32, i32
  }
  func.func @transform_3(%arg0: i32, %arg1: i32, %arg2: i32) -> (i32, i32) {
    %c0_i32 = arith.constant 0 : i32
    return %arg0, %arg1 : i32, i32
  }
}

module attributes {stable_mosaic.version = 11 : i64} {
  func.func @_linear_kernel(%arg0: i32, %arg1: i32, %arg2: i32, %arg3: memref<128x32xf32, #tpu.memory_space<vmem>>, %arg4: memref<32x32xf32, #tpu.memory_space<vmem>>, %arg5: memref<1x32xf32, #tpu.memory_space<vmem>>, %arg6: memref<128x32xf32, #tpu.memory_space<vmem>>, %arg7: memref<128x32xf32, #tpu.memory_space<vmem>>) attributes {dimension_semantics = [#tpu.dimension_semantics<parallel>, #tpu.dimension_semantics<parallel>, #tpu.dimension_semantics<arbitrary>], iteration_bounds = array<i64: 1, 1, 1>, scalar_prefetch = 0 : i64, scratch_operands = 1 : i64, tpu.core_type = #tpu.core_type<tc>, window_params = [{transform_indices = @transform_0, window_bounds = array<i64: 128, 32>}, {transform_indices = @transform_1, window_bounds = array<i64: 32, 32>}, {transform_indices = @transform_2, window_bounds = array<i64: 1, 32>}, {transform_indices = @transform_3, window_bounds = array<i64: 128, 32>}]} {
    %c0_i32 = arith.constant 0 : i32
    %0 = arith.cmpi eq, %arg2, %c0_i32 : i32
    %1 = arith.extui %0 : i1 to i32
    %c0_i32_0 = arith.constant 0 : i32
    %2 = arith.cmpi ne, %1, %c0_i32_0 : i32
    scf.if %2 {
      %cst_10 = arith.constant 0.000000e+00 : f32
      %12 = vector.broadcast %cst_10 : f32 to vector<128x32xf32>
      %c0_11 = arith.constant 0 : index
      %c0_12 = arith.constant 0 : index
      %13 = vector.load %arg7[%c0_11, %c0_12] : memref<128x32xf32, #tpu.memory_space<vmem>>, vector<128x32xf32>
      tpu.vector_store %arg7[%c0_11, %c0_12], %12 {strides = array<i32>} : memref<128x32xf32, #tpu.memory_space<vmem>>, vector<128x32xf32>,
    } else {
    }
    %c0 = arith.constant 0 : index
    %c0_1 = arith.constant 0 : index
    %3 = vector.load %arg7[%c0, %c0_1] : memref<128x32xf32, #tpu.memory_space<vmem>>, vector<128x32xf32>
    %c0_2 = arith.constant 0 : index
    %c0_3 = arith.constant 0 : index
    %4 = vector.load %arg3[%c0_2, %c0_3] : memref<128x32xf32, #tpu.memory_space<vmem>>, vector<128x32xf32>
    %c0_4 = arith.constant 0 : index
    %c0_5 = arith.constant 0 : index
    %5 = vector.load %arg4[%c0_4, %c0_5] : memref<32x32xf32, #tpu.memory_space<vmem>>, vector<32x32xf32>
    %cst = arith.constant dense<0.000000e+00> : vector<128x32xf32>
    %6 = tpu.matmul %4, %5, %cst {dimension_numbers = #tpu.dot_dimension_numbers<[1], [0], [0], [1], [0, 0, 1, 1], [], []>} : vector<128x32xf32>, vector<32x32xf32>, vector<128x32xf32> -> vector<128x32xf32>
    %7 = arith.addf %3, %6 : vector<128x32xf32>
    %c0_6 = arith.constant 0 : index
    %c0_7 = arith.constant 0 : index
    %8 = vector.load %arg7[%c0_6, %c0_7] : memref<128x32xf32, #tpu.memory_space<vmem>>, vector<128x32xf32>
    tpu.vector_store %arg7[%c0_6, %c0_7], %7 {strides = array<i32>} : memref<128x32xf32, #tpu.memory_space<vmem>>, vector<128x32xf32>,
    %c0_i32_8 = arith.constant 0 : i32
    %9 = arith.cmpi eq, %arg2, %c0_i32_8 : i32
    %10 = arith.extui %9 : i1 to i32
    %c0_i32_9 = arith.constant 0 : i32
    %11 = arith.cmpi ne, %10, %c0_i32_9 : i32
    scf.if %11 {
      %c0_10 = arith.constant 0 : index
      %c0_11 = arith.constant 0 : index
      %12 = vector.load %arg7[%c0_10, %c0_11] : memref<128x32xf32, #tpu.memory_space<vmem>>, vector<128x32xf32>
      %c0_12 = arith.constant 0 : index
      %c0_13 = arith.constant 0 : index
      %13 = vector.load %arg5[%c0_12, %c0_13] : memref<1x32xf32, #tpu.memory_space<vmem>>, vector<1x32xf32>
      %14 = vector.broadcast %13 : vector<1x32xf32> to vector<128x32xf32>
      %15 = arith.addf %12, %14 : vector<128x32xf32>
      %c0_14 = arith.constant 0 : index
      %c0_15 = arith.constant 0 : index
      %16 = vector.load %arg6[%c0_14, %c0_15] : memref<128x32xf32, #tpu.memory_space<vmem>>, vector<128x32xf32>
      tpu.vector_store %arg6[%c0_14, %c0_15], %15 {strides = array<i32>} : memref<128x32xf32, #tpu.memory_space<vmem>>, vector<128x32xf32>,
    } else {
    }
    return
  }
  func.func @transform_0(%arg0: i32, %arg1: i32, %arg2: i32) -> (i32, i32) {
    %c0_i32 = arith.constant 0 : i32
    return %arg0, %arg2 : i32, i32
  }
  func.func @transform_1(%arg0: i32, %arg1: i32, %arg2: i32) -> (i32, i32) {
    %c0_i32 = arith.constant 0 : i32
    return %arg2, %arg1 : i32, i32
  }
  func.func @transform_2(%arg0: i32, %arg1: i32, %arg2: i32) -> (i32, i32) {
    %c0_i32 = arith.constant 0 : i32
    %c0_i32_0 = arith.constant 0 : i32
    return %c0_i32, %arg1 : i32, i32
  }
  func.func @transform_3(%arg0: i32, %arg1: i32, %arg2: i32) -> (i32, i32) {
    %c0_i32 = arith.constant 0 : i32
    return %arg0, %arg1 : i32, i32
  }
}

module attributes {stable_mosaic.version = 11 : i64} {
  func.func @_attention_kernel(%arg0: i32, %arg1: memref<1x64x96xf32, #tpu.memory_space<vmem>>, %arg2: memref<1x64x32xf32, #tpu.memory_space<vmem>>) attributes {dimension_semantics = [#tpu.dimension_semantics<parallel>], iteration_bounds = array<i64: 2>, scalar_prefetch = 0 : i64, scratch_operands = 0 : i64, tpu.core_type = #tpu.core_type<tc>, window_params = [{transform_indices = @transform_0, window_bounds = array<i64: 1, 64, 96>}, {transform_indices = @transform_1, window_bounds = array<i64: 1, 64, 32>}]} {
    %c0 = arith.constant 0 : index
    %c0_0 = arith.constant 0 : index
    %c0_1 = arith.constant 0 : index
    %0 = vector.load %arg1[%c0, %c0_0, %c0_1] : memref<1x64x96xf32, #tpu.memory_space<vmem>>, vector<1x64x96xf32>
    %1 = vector.shape_cast %0 : vector<1x64x96xf32> to vector<64x96xf32>
    %2 = vector.extract_strided_slice %1 {offsets = [0, 0], sizes = [64, 8], strides = [1, 1]} : vector<64x96xf32> to vector<64x8xf32>
    %cst = arith.constant 0.353553385 : f32
    %3 = vector.broadcast %cst : f32 to vector<64x8xf32>
    %4 = arith.mulf %2, %3 : vector<64x8xf32>
    %5 = vector.extract_strided_slice %1 {offsets = [0, 32], sizes = [64, 8], strides = [1, 1]} : vector<64x96xf32> to vector<64x8xf32>
    %6 = vector.extract_strided_slice %1 {offsets = [0, 64], sizes = [64, 8], strides = [1, 1]} : vector<64x96xf32> to vector<64x8xf32>
    %cst_2 = arith.constant dense<0.000000e+00> : vector<64x64xf32>
    %7 = tpu.matmul %4, %5, %cst_2 {dimension_numbers = #tpu.dot_dimension_numbers<[1], [1], [0], [0], [0, 0, 1, 0], [], []>} : vector<64x8xf32>, vector<64x8xf32>, vector<64x64xf32> -> vector<64x64xf32>
    %cst_3 = arith.constant dense<0xFF800000> : vector<64xf32>
    %8 = vector.multi_reduction <maximumf>, %7, %cst_3 [1] : vector<64x64xf32> to vector<64xf32>
    %9 = vector.shape_cast %8 : vector<64xf32> to vector<64x1xf32>
    %10 = vector.broadcast %9 : vector<64x1xf32> to vector<64x64xf32>
    %11 = arith.subf %7, %10 : vector<64x64xf32>
    %12 = math.exp %11 : vector<64x64xf32>
    %cst_4 = arith.constant dense<0.000000e+00> : vector<64xf32>
    %13 = vector.multi_reduction <add>, %12, %cst_4 [1] : vector<64x64xf32> to vector<64xf32>
    %14 = vector.shape_cast %13 : vector<64xf32> to vector<64x1xf32>
    %15 = tpu.reciprocal %14 {approx = true} : vector<64x1xf32> -> vector<64x1xf32>
    %16 = vector.broadcast %15 : vector<64x1xf32> to vector<64x64xf32>
    %17 = arith.mulf %12, %16 : vector<64x64xf32>
    %cst_5 = arith.constant dense<0.000000e+00> : vector<64x8xf32>
    %18 = tpu.matmul %17, %6, %cst_5 {dimension_numbers = #tpu.dot_dimension_numbers<[1], [0], [0], [1], [0, 0, 1, 1], [], []>} : vector<64x64xf32>, vector<64x8xf32>, vector<64x8xf32> -> vector<64x8xf32>
    %c0_6 = arith.constant 0 : index
    %c0_7 = arith.constant 0 : index
    %c0_8 = arith.constant 0 : index
    %19 = vector.load %arg2[%c0_6, %c0_7, %c0_8] : memref<1x64x32xf32, #tpu.memory_space<vmem>>, vector<1x64x8xf32>
    %20 = vector.shape_cast %19 : vector<1x64x8xf32> to vector<64x8xf32>
    %21 = vector.shape_cast %18 : vector<64x8xf32> to vector<1x64x8xf32>
    tpu.vector_store %arg2[%c0_6, %c0_7, %c0_8], %21 {strides = array<i32>} : memref<1x64x32xf32, #tpu.memory_space<vmem>>, vector<1x64x8xf32>,
    %22 = vector.extract_strided_slice %1 {offsets = [0, 8], sizes = [64, 8], strides = [1, 1]} : vector<64x96xf32> to vector<64x8xf32>
    %cst_9 = arith.constant 0.353553385 : f32
    %23 = vector.broadcast %cst_9 : f32 to vector<64x8xf32>
    %24 = arith.mulf %22, %23 : vector<64x8xf32>
    %25 = vector.extract_strided_slice %1 {offsets = [0, 40], sizes = [64, 8], strides = [1, 1]} : vector<64x96xf32> to vector<64x8xf32>
    %26 = vector.extract_strided_slice %1 {offsets = [0, 72], sizes = [64, 8], strides = [1, 1]} : vector<64x96xf32> to vector<64x8xf32>
    %cst_10 = arith.constant dense<0.000000e+00> : vector<64x64xf32>
    %27 = tpu.matmul %24, %25, %cst_10 {dimension_numbers = #tpu.dot_dimension_numbers<[1], [1], [0], [0], [0, 0, 1, 0], [], []>} : vector<64x8xf32>, vector<64x8xf32>, vector<64x64xf32> -> vector<64x64xf32>
    %cst_11 = arith.constant dense<0xFF800000> : vector<64xf32>
    %28 = vector.multi_reduction <maximumf>, %27, %cst_11 [1] : vector<64x64xf32> to vector<64xf32>
    %29 = vector.shape_cast %28 : vector<64xf32> to vector<64x1xf32>
    %30 = vector.broadcast %29 : vector<64x1xf32> to vector<64x64xf32>
    %31 = arith.subf %27, %30 : vector<64x64xf32>
    %32 = math.exp %31 : vector<64x64xf32>
    %cst_12 = arith.constant dense<0.000000e+00> : vector<64xf32>
    %33 = vector.multi_reduction <add>, %32, %cst_12 [1] : vector<64x64xf32> to vector<64xf32>
    %34 = vector.shape_cast %33 : vector<64xf32> to vector<64x1xf32>
    %35 = tpu.reciprocal %34 {approx = true} : vector<64x1xf32> -> vector<64x1xf32>
    %36 = vector.broadcast %35 : vector<64x1xf32> to vector<64x64xf32>
    %37 = arith.mulf %32, %36 : vector<64x64xf32>
    %cst_13 = arith.constant dense<0.000000e+00> : vector<64x8xf32>
    %38 = tpu.matmul %37, %26, %cst_13 {dimension_numbers = #tpu.dot_dimension_numbers<[1], [0], [0], [1], [0, 0, 1, 1], [], []>} : vector<64x64xf32>, vector<64x8xf32>, vector<64x8xf32> -> vector<64x8xf32>
    %c0_14 = arith.constant 0 : index
    %c0_15 = arith.constant 0 : index
    %c8 = arith.constant 8 : index
    %39 = vector.load %arg2[%c0_14, %c0_15, %c8] : memref<1x64x32xf32, #tpu.memory_space<vmem>>, vector<1x64x8xf32>
    %40 = vector.shape_cast %39 : vector<1x64x8xf32> to vector<64x8xf32>
    %41 = vector.shape_cast %38 : vector<64x8xf32> to vector<1x64x8xf32>
    tpu.vector_store %arg2[%c0_14, %c0_15, %c8], %41 {strides = array<i32>} : memref<1x64x32xf32, #tpu.memory_space<vmem>>, vector<1x64x8xf32>,
    %42 = vector.extract_strided_slice %1 {offsets = [0, 16], sizes = [64, 8], strides = [1, 1]} : vector<64x96xf32> to vector<64x8xf32>
    %cst_16 = arith.constant 0.353553385 : f32
    %43 = vector.broadcast %cst_16 : f32 to vector<64x8xf32>
    %44 = arith.mulf %42, %43 : vector<64x8xf32>
    %45 = vector.extract_strided_slice %1 {offsets = [0, 48], sizes = [64, 8], strides = [1, 1]} : vector<64x96xf32> to vector<64x8xf32>
    %46 = vector.extract_strided_slice %1 {offsets = [0, 80], sizes = [64, 8], strides = [1, 1]} : vector<64x96xf32> to vector<64x8xf32>
    %cst_17 = arith.constant dense<0.000000e+00> : vector<64x64xf32>
    %47 = tpu.matmul %44, %45, %cst_17 {dimension_numbers = #tpu.dot_dimension_numbers<[1], [1], [0], [0], [0, 0, 1, 0], [], []>} : vector<64x8xf32>, vector<64x8xf32>, vector<64x64xf32> -> vector<64x64xf32>
    %cst_18 = arith.constant dense<0xFF800000> : vector<64xf32>
    %48 = vector.multi_reduction <maximumf>, %47, %cst_18 [1] : vector<64x64xf32> to vector<64xf32>
    %49 = vector.shape_cast %48 : vector<64xf32> to vector<64x1xf32>
    %50 = vector.broadcast %49 : vector<64x1xf32> to vector<64x64xf32>
    %51 = arith.subf %47, %50 : vector<64x64xf32>
    %52 = math.exp %51 : vector<64x64xf32>
    %cst_19 = arith.constant dense<0.000000e+00> : vector<64xf32>
    %53 = vector.multi_reduction <add>, %52, %cst_19 [1] : vector<64x64xf32> to vector<64xf32>
    %54 = vector.shape_cast %53 : vector<64xf32> to vector<64x1xf32>
    %55 = tpu.reciprocal %54 {approx = true} : vector<64x1xf32> -> vector<64x1xf32>
    %56 = vector.broadcast %55 : vector<64x1xf32> to vector<64x64xf32>
    %57 = arith.mulf %52, %56 : vector<64x64xf32>
    %cst_20 = arith.constant dense<0.000000e+00> : vector<64x8xf32>
    %58 = tpu.matmul %57, %46, %cst_20 {dimension_numbers = #tpu.dot_dimension_numbers<[1], [0], [0], [1], [0, 0, 1, 1], [], []>} : vector<64x64xf32>, vector<64x8xf32>, vector<64x8xf32> -> vector<64x8xf32>
    %c0_21 = arith.constant 0 : index
    %c0_22 = arith.constant 0 : index
    %c16 = arith.constant 16 : index
    %59 = vector.load %arg2[%c0_21, %c0_22, %c16] : memref<1x64x32xf32, #tpu.memory_space<vmem>>, vector<1x64x8xf32>
    %60 = vector.shape_cast %59 : vector<1x64x8xf32> to vector<64x8xf32>
    %61 = vector.shape_cast %58 : vector<64x8xf32> to vector<1x64x8xf32>
    tpu.vector_store %arg2[%c0_21, %c0_22, %c16], %61 {strides = array<i32>} : memref<1x64x32xf32, #tpu.memory_space<vmem>>, vector<1x64x8xf32>,
    %62 = vector.extract_strided_slice %1 {offsets = [0, 24], sizes = [64, 8], strides = [1, 1]} : vector<64x96xf32> to vector<64x8xf32>
    %cst_23 = arith.constant 0.353553385 : f32
    %63 = vector.broadcast %cst_23 : f32 to vector<64x8xf32>
    %64 = arith.mulf %62, %63 : vector<64x8xf32>
    %65 = vector.extract_strided_slice %1 {offsets = [0, 56], sizes = [64, 8], strides = [1, 1]} : vector<64x96xf32> to vector<64x8xf32>
    %66 = vector.extract_strided_slice %1 {offsets = [0, 88], sizes = [64, 8], strides = [1, 1]} : vector<64x96xf32> to vector<64x8xf32>
    %cst_24 = arith.constant dense<0.000000e+00> : vector<64x64xf32>
    %67 = tpu.matmul %64, %65, %cst_24 {dimension_numbers = #tpu.dot_dimension_numbers<[1], [1], [0], [0], [0, 0, 1, 0], [], []>} : vector<64x8xf32>, vector<64x8xf32>, vector<64x64xf32> -> vector<64x64xf32>
    %cst_25 = arith.constant dense<0xFF800000> : vector<64xf32>
    %68 = vector.multi_reduction <maximumf>, %67, %cst_25 [1] : vector<64x64xf32> to vector<64xf32>
    %69 = vector.shape_cast %68 : vector<64xf32> to vector<64x1xf32>
    %70 = vector.broadcast %69 : vector<64x1xf32> to vector<64x64xf32>
    %71 = arith.subf %67, %70 : vector<64x64xf32>
    %72 = math.exp %71 : vector<64x64xf32>
    %cst_26 = arith.constant dense<0.000000e+00> : vector<64xf32>
    %73 = vector.multi_reduction <add>, %72, %cst_26 [1] : vector<64x64xf32> to vector<64xf32>
    %74 = vector.shape_cast %73 : vector<64xf32> to vector<64x1xf32>
    %75 = tpu.reciprocal %74 {approx = true} : vector<64x1xf32> -> vector<64x1xf32>
    %76 = vector.broadcast %75 : vector<64x1xf32> to vector<64x64xf32>
    %77 = arith.mulf %72, %76 : vector<64x64xf32>
    %cst_27 = arith.constant dense<0.000000e+00> : vector<64x8xf32>
    %78 = tpu.matmul %77, %66, %cst_27 {dimension_numbers = #tpu.dot_dimension_numbers<[1], [0], [0], [1], [0, 0, 1, 1], [], []>} : vector<64x64xf32>, vector<64x8xf32>, vector<64x8xf32> -> vector<64x8xf32>
    %c0_28 = arith.constant 0 : index
    %c0_29 = arith.constant 0 : index
    %c24 = arith.constant 24 : index
    %79 = vector.load %arg2[%c0_28, %c0_29, %c24] : memref<1x64x32xf32, #tpu.memory_space<vmem>>, vector<1x64x8xf32>
    %80 = vector.shape_cast %79 : vector<1x64x8xf32> to vector<64x8xf32>
    %81 = vector.shape_cast %78 : vector<64x8xf32> to vector<1x64x8xf32>
    tpu.vector_store %arg2[%c0_28, %c0_29, %c24], %81 {strides = array<i32>} : memref<1x64x32xf32, #tpu.memory_space<vmem>>, vector<1x64x8xf32>,
    return
  }
  func.func @transform_0(%arg0: i32) -> (i32, i32, i32) {
    %c0_i32 = arith.constant 0 : i32
    %c0_i32_0 = arith.constant 0 : i32
    %c0_i32_1 = arith.constant 0 : i32
    return %arg0, %c0_i32, %c0_i32_0 : i32, i32, i32
  }
  func.func @transform_1(%arg0: i32) -> (i32, i32, i32) {
    %c0_i32 = arith.constant 0 : i32
    %c0_i32_0 = arith.constant 0 : i32
    %c0_i32_1 = arith.constant 0 : i32
    return %arg0, %c0_i32, %c0_i32_0 : i32, i32, i32
  }
}

</mosaic_0001>

<llo_original>
// kernel: qkv_attention_forward.3
$region0: #{qkv_attention_forward.3}
  #allocation0 [shape = 'u32[]', space=smem, size = 0x4, offset = 0x4, fixed_abs, tag = 'smem constant byte address 0x4 - core index']
  #allocation1 [shape = 'u32[144,128]{1,0:T(1,128)}', space=vmem, size = 0x12000, scoped, tag = 'internal scratch']
  #allocation2 [shape = 'f32[128,96]{1,0:T(8,128)}', space=vmem, size = 0x10000, scoped, tag = 'scratch operand']
  %s0 = inlined_call_operand.vmem [shape: f32[128,32], index: 0, kind: input, shape index: {}]
  %s1 = inlined_call_operand.vmem [shape: f32[32,96], index: 1, kind: input, shape index: {}]
  %s2 = inlined_call_operand.vmem [shape: f32[1,96], index: 2, kind: input, shape index: {}]
  %s3 = inlined_call_operand.vmem [shape: f32[128,96], index: 3, kind: output, shape index: {}]
  %s4 = sld [smem:[#allocation0]]
  $region30: #{qkv_attention_forward.3} parent=0
    _
  %s6 = ssub.s32 1, %s4
  %s7 = scalar_select 0, %s6, %s4
  // Predicated region
  $region2: #{qkv_attention_forward.3} parent=0 // pred_check
    _
  $region3: #{qkv_attention_forward.3} parent=0 // pred_check_branch
    %9 = sbr.rel (0) target = $region5
  $region4: #{qkv_attention_forward.3} parent=0 // pred_region
    _
  $region5: #{qkv_attention_forward.3} parent=0 // pred_fallthru
    _
  // Predicated region
  $region6: #{qkv_attention_forward.3} parent=0 // pred_check
    _
  $region7: #{qkv_attention_forward.3} parent=0 // pred_check_branch
    %11 = sbr.rel (0) target = $region9
  $region8: #{qkv_attention_forward.3} parent=0 // pred_region
    _
  $region9: #{qkv_attention_forward.3} parent=0 // pred_fallthru
    _
  // Predicated region
  $region10: #{qkv_attention_forward.3} parent=0 // pred_check
    _
  $region11: #{qkv_attention_forward.3} parent=0 // pred_check_branch
    %13 = sbr.rel (0) target = $region13
  $region12: #{qkv_attention_forward.3} parent=0 // pred_region
    _
  $region13: #{qkv_attention_forward.3} parent=0 // pred_fallthru
    _
  %p14 = scmp.eq.s32.totalorder 0, 0
  // Predicated region
  $region14: #{qkv_attention_forward.3} parent=0 // pred_check
    %p15 = pneg %p14
  $region15: #{qkv_attention_forward.3} parent=0 // pred_check_branch
    %17 = sbr.rel (%p15) target = $region17
  $region16: #{qkv_attention_forward.3} parent=0 // pred_region
    %vm18 = vcmask 785408
    %19 = vst.msk [vmem:[#allocation2] sm:$0xff] %vm18, 0.0
    %20 = vst.msk [vmem:[#allocation2 + $0x8] sm:$0xff] %vm18, 0.0
    %21 = vst.msk [vmem:[#allocation2 + $0x10] sm:$0xff] %vm18, 0.0
    %22 = vst.msk [vmem:[#allocation2 + $0x18] sm:$0xff] %vm18, 0.0
    %23 = vst.msk [vmem:[#allocation2 + $0x20] sm:$0xff] %vm18, 0.0
    %24 = vst.msk [vmem:[#allocation2 + $0x28] sm:$0xff] %vm18, 0.0
    %25 = vst.msk [vmem:[#allocation2 + $0x30] sm:$0xff] %vm18, 0.0
    %26 = vst.msk [vmem:[#allocation2 + $0x38] sm:$0xff] %vm18, 0.0
    %27 = vst.msk [vmem:[#allocation2 + $0x40] sm:$0xff] %vm18, 0.0
    %28 = vst.msk [vmem:[#allocation2 + $0x48] sm:$0xff] %vm18, 0.0
    %29 = vst.msk [vmem:[#allocation2 + $0x50] sm:$0xff] %vm18, 0.0
    %30 = vst.msk [vmem:[#allocation2 + $0x58] sm:$0xff] %vm18, 0.0
    %31 = vst.msk [vmem:[#allocation2 + $0x60] sm:$0xff] %vm18, 0.0
    %32 = vst.msk [vmem:[#allocation2 + $0x68] sm:$0xff] %vm18, 0.0
    %33 = vst.msk [vmem:[#allocation2 + $0x70] sm:$0xff] %vm18, 0.0
    %34 = vst.msk [vmem:[#allocation2 + $0x78] sm:$0xff] %vm18, 0.0
  $region17: #{qkv_attention_forward.3} parent=0 // pred_fallthru
    _
  %v35 = vld [vmem:[#allocation2] sm:$0xff]
  %v36 = vld [vmem:[#allocation2 + $0x8] sm:$0xff]
  %v37 = vld [vmem:[#allocation2 + $0x10] sm:$0xff]
  %v38 = vld [vmem:[#allocation2 + $0x18] sm:$0xff]
  %v39 = vld [vmem:[#allocation2 + $0x20] sm:$0xff]
  %v40 = vld [vmem:[#allocation2 + $0x28] sm:$0xff]
  %v41 = vld [vmem:[#allocation2 + $0x30] sm:$0xff]
  %v42 = vld [vmem:[#allocation2 + $0x38] sm:$0xff]
  %v43 = vld [vmem:[#allocation2 + $0x40] sm:$0xff]
  %v44 = vld [vmem:[#allocation2 + $0x48] sm:$0xff]
  %v45 = vld [vmem:[#allocation2 + $0x50] sm:$0xff]
  %v46 = vld [vmem:[#allocation2 + $0x58] sm:$0xff]
  %v47 = vld [vmem:[#allocation2 + $0x60] sm:$0xff]
  %v48 = vld [vmem:[#allocation2 + $0x68] sm:$0xff]
  %v49 = vld [vmem:[#allocation2 + $0x70] sm:$0xff]
  %v50 = vld [vmem:[#allocation2 + $0x78] sm:$0xff]
  %v51 = vld [vmem:[%s0] sm:$0xff]
  %v52 = vld [vmem:[%s0 + $0x8] sm:$0xff]
  %v53 = vld [vmem:[%s0 + $0x10] sm:$0xff]
  %v54 = vld [vmem:[%s0 + $0x18] sm:$0xff]
  %v55 = vld [vmem:[%s0 + $0x20] sm:$0xff]
  %v56 = vld [vmem:[%s0 + $0x28] sm:$0xff]
  %v57 = vld [vmem:[%s0 + $0x30] sm:$0xff]
  %v58 = vld [vmem:[%s0 + $0x38] sm:$0xff]
  %v59 = vld [vmem:[%s0 + $0x40] sm:$0xff]
  %v60 = vld [vmem:[%s0 + $0x48] sm:$0xff]
  %v61 = vld [vmem:[%s0 + $0x50] sm:$0xff]
  %v62 = vld [vmem:[%s0 + $0x58] sm:$0xff]
  %v63 = vld [vmem:[%s0 + $0x60] sm:$0xff]
  %v64 = vld [vmem:[%s0 + $0x68] sm:$0xff]
  %v65 = vld [vmem:[%s0 + $0x70] sm:$0xff]
  %v66 = vld [vmem:[%s0 + $0x78] sm:$0xff]
  %v67 = vld [vmem:[%s1] sm:$0xff]
  %v68 = vld [vmem:[%s1 + $0x8] sm:$0xff]
  %v69 = vld [vmem:[%s1 + $0x10] sm:$0xff]
  %v70 = vld [vmem:[%s1 + $0x18] sm:$0xff]
  %vm71 = vcmask 261120
  %v73 = vsel %vm71, %v51, 0
  %v76 = vsel %vm71, %v52, 0
  %v79 = vsel %vm71, %v53, 0
  %v82 = vsel %vm71, %v54, 0
  %v85 = vsel %vm71, %v55, 0
  %v88 = vsel %vm71, %v56, 0
  %v91 = vsel %vm71, %v57, 0
  %v94 = vsel %vm71, %v58, 0
  %v97 = vsel %vm71, %v59, 0
  %v100 = vsel %vm71, %v60, 0
  %v103 = vsel %vm71, %v61, 0
  %v106 = vsel %vm71, %v62, 0
  %v109 = vsel %vm71, %v63, 0
  %v112 = vsel %vm71, %v64, 0
  %v115 = vsel %vm71, %v65, 0
  %v118 = vsel %vm71, %v66, 0
  %120 = vmatprep.subr.mxu0 0.0
  %121 = vmatpush1.msra.mxu0 0.0
  %122 = vmatprep.subr.mxu0 0.0
  %123 = vmatpush1.msra.mxu0 0.0
  %124 = vmatprep.subr.mxu0 0.0
  %125 = vmatpush1.msra.mxu0 0.0
  %126 = vmatprep.subr.mxu0 0.0
  %127 = vmatpush1.msra.mxu0 0.0
  %128 = vmatprep.subr.mxu0 0.0
  %129 = vmatpush1.msra.mxu0 0.0
  %130 = vmatprep.subr.mxu0 0.0
  %131 = vmatpush1.msra.mxu0 0.0
  %132 = vmatprep.subr.mxu0 0.0
  %133 = vmatpush1.msra.mxu0 0.0
  %134 = vmatprep.subr.mxu0 0.0
  %135 = vmatpush1.msra.mxu0 0.0
  %136 = vmatprep.subr.mxu0 0.0
  %137 = vmatpush1.msra.mxu0 0.0
  %138 = vmatprep.subr.mxu0 0.0
  %139 = vmatpush1.msra.mxu0 0.0
  %140 = vmatprep.subr.mxu0 0.0
  %141 = vmatpush1.msra.mxu0 0.0
  %142 = vmatprep.subr.mxu0 0.0
  %143 = vmatpush1.msra.mxu0 0.0
  %144 = vmatprep.subr.mxu0 0.0
  %145 = vmatpush1.msra.mxu0 %v70
  %146 = vmatprep.subr.mxu0 0.0
  %147 = vmatpush1.msra.mxu0 %v69
  %148 = vmatprep.subr.mxu0 0.0
  %149 = vmatpush1.msra.mxu0 %v68
  %150 = vmatprep.subr.mxu0 0.0
  %151 = vmatpush1.msra.mxu0 %v67
  %152 = vmatprep.subr.mxu0 0.0
  %153 = vmatpush2.msra.mxu0 0.0
  %154 = vmatprep.subr.mxu0 0.0
  %155 = vmatpush2.msra.mxu0 0.0
  %156 = vmatprep.subr.mxu0 0.0
  %157 = vmatpush2.msra.mxu0 0.0
  %158 = vmatprep.subr.mxu0 0.0
  %159 = vmatpush2.msra.mxu0 0.0
  %160 = vmatprep.subr.mxu0 0.0
  %161 = vmatpush2.msra.mxu0 0.0
  %162 = vmatprep.subr.mxu0 0.0
  %163 = vmatpush2.msra.mxu0 0.0
  %164 = vmatprep.subr.mxu0 0.0
  %165 = vmatpush2.msra.mxu0 0.0
  %166 = vmatprep.subr.mxu0 0.0
  %167 = vmatpush2.msra.mxu0 0.0
  %168 = vmatprep.subr.mxu0 0.0
  %169 = vmatpush2.msra.mxu0 0.0
  %170 = vmatprep.subr.mxu0 0.0
  %171 = vmatpush2.msra.mxu0 0.0
  %172 = vmatprep.subr.mxu0 0.0
  %173 = vmatpush2.msra.mxu0 0.0
  %174 = vmatprep.subr.mxu0 0.0
  %175 = vmatpush2.msra.mxu0 0.0
  %176 = vmatprep.subr.mxu0 0.0
  %177 = vmatpush2.msra.mxu0 0.0
  %178 = vmatprep.subr.mxu0 0.0
  %179 = vmatpush2.msra.mxu0 0.0
  %180 = vmatprep.subr.mxu0 0.0
  %181 = vmatpush2.msra.mxu0 0.0
  %182 = vmatprep.subr.mxu0 0.0
  %183 = vmatpush2.msra.mxu0 0.0
  %184 = vmatprep.mubr.f32.mxu0 0.0
  %185 = vmatmul.mubr.f32.gmra.mxu0 %v73
  %v186 = vpop.f32.mrf.mxu0
  %v187 = vadd.f32 0.0, %v186
  %v188 = vpop.f32.mrf.mxu0
  %189 = vmatprep.mubr.f32.mxu0 0.0
  %190 = vmatmul.mubr.f32.gmra.mxu0 %v76
  %v191 = vpop.f32.mrf.mxu0
  %v192 = vadd.f32 0.0, %v191
  %v193 = vpop.f32.mrf.mxu0
  %194 = vmatprep.mubr.f32.mxu0 0.0
  %195 = vmatmul.mubr.f32.gmra.mxu0 %v79
  %v196 = vpop.f32.mrf.mxu0
  %v197 = vadd.f32 0.0, %v196
  %v198 = vpop.f32.mrf.mxu0
  %199 = vmatprep.mubr.f32.mxu0 0.0
  %200 = vmatmul.mubr.f32.gmra.mxu0 %v82
  %v201 = vpop.f32.mrf.mxu0
  %v202 = vadd.f32 0.0, %v201
  %v203 = vpop.f32.mrf.mxu0
  %204 = vmatprep.mubr.f32.mxu0 0.0
  %205 = vmatmul.mubr.f32.gmra.mxu0 %v85
  %v206 = vpop.f32.mrf.mxu0
  %v207 = vadd.f32 0.0, %v206
  %v208 = vpop.f32.mrf.mxu0
  %209 = vmatprep.mubr.f32.mxu0 0.0
  %210 = vmatmul.mubr.f32.gmra.mxu0 %v88
  %v211 = vpop.f32.mrf.mxu0
  %v212 = vadd.f32 0.0, %v211
  %v213 = vpop.f32.mrf.mxu0
  %214 = vmatprep.mubr.f32.mxu0 0.0
  %215 = vmatmul.mubr.f32.gmra.mxu0 %v91
  %v216 = vpop.f32.mrf.mxu0
  %v217 = vadd.f32 0.0, %v216
  %v218 = vpop.f32.mrf.mxu0
  %219 = vmatprep.mubr.f32.mxu0 0.0
  %220 = vmatmul.mubr.f32.gmra.mxu0 %v94
  %v221 = vpop.f32.mrf.mxu0
  %v222 = vadd.f32 0.0, %v221
  %v223 = vpop.f32.mrf.mxu0
  %224 = vmatprep.mubr.f32.mxu0 0.0
  %225 = vmatmul.mubr.f32.gmra.mxu0 %v97
  %v226 = vpop.f32.mrf.mxu0
  %v227 = vadd.f32 0.0, %v226
  %v228 = vpop.f32.mrf.mxu0
  %229 = vmatprep.mubr.f32.mxu0 0.0
  %230 = vmatmul.mubr.f32.gmra.mxu0 %v100
  %v231 = vpop.f32.mrf.mxu0
  %v232 = vadd.f32 0.0, %v231
  %v233 = vpop.f32.mrf.mxu0
  %234 = vmatprep.mubr.f32.mxu0 0.0
  %235 = vmatmul.mubr.f32.gmra.mxu0 %v103
  %v236 = vpop.f32.mrf.mxu0
  %v237 = vadd.f32 0.0, %v236
  %v238 = vpop.f32.mrf.mxu0
  %239 = vmatprep.mubr.f32.mxu0 0.0
  %240 = vmatmul.mubr.f32.gmra.mxu0 %v106
  %v241 = vpop.f32.mrf.mxu0
  %v242 = vadd.f32 0.0, %v241
  %v243 = vpop.f32.mrf.mxu0
  %244 = vmatprep.mubr.f32.mxu0 0.0
  %245 = vmatmul.mubr.f32.gmra.mxu0 %v109
  %v246 = vpop.f32.mrf.mxu0
  %v247 = vadd.f32 0.0, %v246
  %v248 = vpop.f32.mrf.mxu0
  %249 = vmatprep.mubr.f32.mxu0 0.0
  %250 = vmatmul.mubr.f32.gmra.mxu0 %v112
  %v251 = vpop.f32.mrf.mxu0
  %v252 = vadd.f32 0.0, %v251
  %v253 = vpop.f32.mrf.mxu0
  %254 = vmatprep.mubr.f32.mxu0 0.0
  %255 = vmatmul.mubr.f32.gmra.mxu0 %v115
  %v256 = vpop.f32.mrf.mxu0
  %v257 = vadd.f32 0.0, %v256
  %v258 = vpop.f32.mrf.mxu0
  %259 = vmatprep.mubr.f32.mxu0 0.0
  %260 = vmatmul.mubr.f32.gmra.mxu0 %v118
  %v261 = vpop.f32.mrf.mxu0
  %v262 = vadd.f32 0.0, %v261
  %v263 = vpop.f32.mrf.mxu0
  %264 = vdwg.mxu0
  %v265 = vadd.f32 %v35, %v187
  %v266 = vadd.f32 %v36, %v192
  %v267 = vadd.f32 %v37, %v197
  %v268 = vadd.f32 %v38, %v202
  %v269 = vadd.f32 %v39, %v207
  %v270 = vadd.f32 %v40, %v212
  %v271 = vadd.f32 %v41, %v217
  %v272 = vadd.f32 %v42, %v222
  %v273 = vadd.f32 %v43, %v227
  %v274 = vadd.f32 %v44, %v232
  %v275 = vadd.f32 %v45, %v237
  %v276 = vadd.f32 %v46, %v242
  %v277 = vadd.f32 %v47, %v247
  %v278 = vadd.f32 %v48, %v252
  %v279 = vadd.f32 %v49, %v257
  %v280 = vadd.f32 %v50, %v262
  %vm281 = vcmask 785408
  %282 = vst.msk [vmem:[#allocation2] sm:$0xff] %vm281, %v265
  %283 = vst.msk [vmem:[#allocation2 + $0x8] sm:$0xff] %vm281, %v266
  %284 = vst.msk [vmem:[#allocation2 + $0x10] sm:$0xff] %vm281, %v267
  %285 = vst.msk [vmem:[#allocation2 + $0x18] sm:$0xff] %vm281, %v268
  %286 = vst.msk [vmem:[#allocation2 + $0x20] sm:$0xff] %vm281, %v269
  %287 = vst.msk [vmem:[#allocation2 + $0x28] sm:$0xff] %vm281, %v270
  %288 = vst.msk [vmem:[#allocation2 + $0x30] sm:$0xff] %vm281, %v271
  %289 = vst.msk [vmem:[#allocation2 + $0x38] sm:$0xff] %vm281, %v272
  %290 = vst.msk [vmem:[#allocation2 + $0x40] sm:$0xff] %vm281, %v273
  %291 = vst.msk [vmem:[#allocation2 + $0x48] sm:$0xff] %vm281, %v274
  %292 = vst.msk [vmem:[#allocation2 + $0x50] sm:$0xff] %vm281, %v275
  %293 = vst.msk [vmem:[#allocation2 + $0x58] sm:$0xff] %vm281, %v276
  %294 = vst.msk [vmem:[#allocation2 + $0x60] sm:$0xff] %vm281, %v277
  %295 = vst.msk [vmem:[#allocation2 + $0x68] sm:$0xff] %vm281, %v278
  %296 = vst.msk [vmem:[#allocation2 + $0x70] sm:$0xff] %vm281, %v279
  %297 = vst.msk [vmem:[#allocation2 + $0x78] sm:$0xff] %vm281, %v280
  // Predicated region
  $region18: #{qkv_attention_forward.3} parent=0 // pred_check
    %p298 = pneg %p14
  $region19: #{qkv_attention_forward.3} parent=0 // pred_check_branch
    %300 = sbr.rel (%p298) target = $region21
  $region20: #{qkv_attention_forward.3} parent=0 // pred_region
    %v301 = vld [vmem:[#allocation2] sm:$0xff]
    %v302 = vld [vmem:[#allocation2 + $0x8] sm:$0xff]
    %v303 = vld [vmem:[#allocation2 + $0x10] sm:$0xff]
    %v304 = vld [vmem:[#allocation2 + $0x18] sm:$0xff]
    %v305 = vld [vmem:[#allocation2 + $0x20] sm:$0xff]
    %v306 = vld [vmem:[#allocation2 + $0x28] sm:$0xff]
    %v307 = vld [vmem:[#allocation2 + $0x30] sm:$0xff]
    %v308 = vld [vmem:[#allocation2 + $0x38] sm:$0xff]
    %v309 = vld [vmem:[#allocation2 + $0x40] sm:$0xff]
    %v310 = vld [vmem:[#allocation2 + $0x48] sm:$0xff]
    %v311 = vld [vmem:[#allocation2 + $0x50] sm:$0xff]
    %v312 = vld [vmem:[#allocation2 + $0x58] sm:$0xff]
    %v313 = vld [vmem:[#allocation2 + $0x60] sm:$0xff]
    %v314 = vld [vmem:[#allocation2 + $0x68] sm:$0xff]
    %v315 = vld [vmem:[#allocation2 + $0x70] sm:$0xff]
    %v316 = vld [vmem:[#allocation2 + $0x78] sm:$0xff]
    %v317 = vld [vmem:[%s2] sm:$0x1]
    %v319 = vlaneseq
    %v320 = vshrl.u32 %v319, 7
    %v321 = vsub.s32 0, %v320
    %v322 = vrot.slane %v317, %v321
    %v324 = vadd.f32 %v301, %v322
    %v325 = vadd.f32 %v302, %v322
    %v326 = vadd.f32 %v303, %v322
    %v327 = vadd.f32 %v304, %v322
    %v328 = vadd.f32 %v305, %v322
    %v329 = vadd.f32 %v306, %v322
    %v330 = vadd.f32 %v307, %v322
    %v331 = vadd.f32 %v308, %v322
    %v332 = vadd.f32 %v309, %v322
    %v333 = vadd.f32 %v310, %v322
    %v334 = vadd.f32 %v311, %v322
    %v335 = vadd.f32 %v312, %v322
    %v336 = vadd.f32 %v313, %v322
    %v337 = vadd.f32 %v314, %v322
    %v338 = vadd.f32 %v315, %v322
    %v339 = vadd.f32 %v316, %v322
    %340 = vst.msk [vmem:[%s3] sm:$0xff] %vm281, %v324
    %341 = vst.msk [vmem:[%s3 + $0x8] sm:$0xff] %vm281, %v325
    %342 = vst.msk [vmem:[%s3 + $0x10] sm:$0xff] %vm281, %v326
    %343 = vst.msk [vmem:[%s3 + $0x18] sm:$0xff] %vm281, %v327
    %344 = vst.msk [vmem:[%s3 + $0x20] sm:$0xff] %vm281, %v328
    %345 = vst.msk [vmem:[%s3 + $0x28] sm:$0xff] %vm281, %v329
    %346 = vst.msk [vmem:[%s3 + $0x30] sm:$0xff] %vm281, %v330
    %347 = vst.msk [vmem:[%s3 + $0x38] sm:$0xff] %vm281, %v331
    %348 = vst.msk [vmem:[%s3 + $0x40] sm:$0xff] %vm281, %v332
    %349 = vst.msk [vmem:[%s3 + $0x48] sm:$0xff] %vm281, %v333
    %350 = vst.msk [vmem:[%s3 + $0x50] sm:$0xff] %vm281, %v334
    %351 = vst.msk [vmem:[%s3 + $0x58] sm:$0xff] %vm281, %v335
    %352 = vst.msk [vmem:[%s3 + $0x60] sm:$0xff] %vm281, %v336
    %353 = vst.msk [vmem:[%s3 + $0x68] sm:$0xff] %vm281, %v337
    %354 = vst.msk [vmem:[%s3 + $0x70] sm:$0xff] %vm281, %v338
    %355 = vst.msk [vmem:[%s3 + $0x78] sm:$0xff] %vm281, %v339
  $region21: #{qkv_attention_forward.3} parent=0 // pred_fallthru
    _
  // Predicated region
  $region22: #{qkv_attention_forward.3} parent=0 // pred_check
    _
  $region23: #{qkv_attention_forward.3} parent=0 // pred_check_branch
    %357 = sbr.rel (0) target = $region25
  $region24: #{qkv_attention_forward.3} parent=0 // pred_region
    _
  $region25: #{qkv_attention_forward.3} parent=0 // pred_fallthru
    _
  // Predicated region
  $region26: #{qkv_attention_forward.3} parent=0 // pred_check
    _
  $region27: #{qkv_attention_forward.3} parent=0 // pred_check_branch
    %359 = sbr.rel (0) target = $region29
  $region28: #{qkv_attention_forward.3} parent=0 // pred_region
    _
  $region29: #{qkv_attention_forward.3} parent=0 // pred_fallthru
    _

// kernel: qkv_attention_forward.5
$region0: #{qkv_attention_forward.5}
  #allocation0 [shape = 'u32[]', space=smem, size = 0x4, offset = 0x4, fixed_abs, tag = 'smem constant byte address 0x4 - core index']
  #allocation1 [shape = 'u32[144,128]{1,0:T(1,128)}', space=vmem, size = 0x12000, scoped, tag = 'internal scratch']
  #allocation2 [shape = 'f32[128,32]{1,0:T(8,128)}', space=vmem, size = 0x10000, scoped, tag = 'scratch operand']
  %s0 = inlined_call_operand.vmem [shape: f32[128,32], index: 0, kind: input, shape index: {}]
  %s1 = inlined_call_operand.vmem [shape: f32[32,32], index: 1, kind: input, shape index: {}]
  %s2 = inlined_call_operand.vmem [shape: f32[1,32], index: 2, kind: input, shape index: {}]
  %s3 = inlined_call_operand.hbm [shape: f32[128,32], index: 3, kind: output, shape index: {}]
  %s4 = sld [smem:[#allocation0]]
  $region30: #{qkv_attention_forward.5} parent=0
    _
  %s6 = ssub.s32 1, %s4
  %s7 = scalar_select 0, %s6, %s4
  $region1: #{qkv_attention_forward.5} parent=0
    #allocation3 [shape = 'u8[65536]{0}', space=vmem, size = 0x10000, scoped, tag = 'output window, operand 0, single buffered']
    #allocation4 [shape = 's32[1]{0}', space=sflag, size = 0x4, scoped, tag = 'scoped memory for qkv_attention_forward.5']
    %8 = vsyncpa [#allocation4], 0
    // Predicated region
    $region2: #{qkv_attention_forward.5} parent=1 // pred_check
      _
    $region3: #{qkv_attention_forward.5} parent=1 // pred_check_branch
      %10 = sbr.rel (0) target = $region5
    $region4: #{qkv_attention_forward.5} parent=1 // pred_region
      _
    $region5: #{qkv_attention_forward.5} parent=1 // pred_fallthru
      _
    // Predicated region
    $region6: #{qkv_attention_forward.5} parent=1 // pred_check
      _
    $region7: #{qkv_attention_forward.5} parent=1 // pred_check_branch
      %12 = sbr.rel (0) target = $region9
    $region8: #{qkv_attention_forward.5} parent=1 // pred_region
      _
    $region9: #{qkv_attention_forward.5} parent=1 // pred_fallthru
      _
    // Predicated region
    $region10: #{qkv_attention_forward.5} parent=1 // pred_check
      _
    $region11: #{qkv_attention_forward.5} parent=1 // pred_check_branch
      %14 = sbr.rel (0) target = $region13
    $region12: #{qkv_attention_forward.5} parent=1 // pred_region
      _
    $region13: #{qkv_attention_forward.5} parent=1 // pred_fallthru
      _
    %p15 = scmp.eq.s32.totalorder 0, 0
    // Predicated region
    $region14: #{qkv_attention_forward.5} parent=1 // pred_check
      %p16 = pneg %p15
    $region15: #{qkv_attention_forward.5} parent=1 // pred_check_branch
      %18 = sbr.rel (%p16) target = $region17
    $region16: #{qkv_attention_forward.5} parent=1 // pred_region
      %vm19 = vcmask 261120
      %20 = vst.msk [vmem:[#allocation2] sm:$0xff] %vm19, 0.0
      %21 = vst.msk [vmem:[#allocation2 + $0x8] sm:$0xff] %vm19, 0.0
      %22 = vst.msk [vmem:[#allocation2 + $0x10] sm:$0xff] %vm19, 0.0
      %23 = vst.msk [vmem:[#allocation2 + $0x18] sm:$0xff] %vm19, 0.0
      %24 = vst.msk [vmem:[#allocation2 + $0x20] sm:$0xff] %vm19, 0.0
      %25 = vst.msk [vmem:[#allocation2 + $0x28] sm:$0xff] %vm19, 0.0
      %26 = vst.msk [vmem:[#allocation2 + $0x30] sm:$0xff] %vm19, 0.0
      %27 = vst.msk [vmem:[#allocation2 + $0x38] sm:$0xff] %vm19, 0.0
      %28 = vst.msk [vmem:[#allocation2 + $0x40] sm:$0xff] %vm19, 0.0
      %29 = vst.msk [vmem:[#allocation2 + $0x48] sm:$0xff] %vm19, 0.0
      %30 = vst.msk [vmem:[#allocation2 + $0x50] sm:$0xff] %vm19, 0.0
      %31 = vst.msk [vmem:[#allocation2 + $0x58] sm:$0xff] %vm19, 0.0
      %32 = vst.msk [vmem:[#allocation2 + $0x60] sm:$0xff] %vm19, 0.0
      %33 = vst.msk [vmem:[#allocation2 + $0x68] sm:$0xff] %vm19, 0.0
      %34 = vst.msk [vmem:[#allocation2 + $0x70] sm:$0xff] %vm19, 0.0
      %35 = vst.msk [vmem:[#allocation2 + $0x78] sm:$0xff] %vm19, 0.0
    $region17: #{qkv_attention_forward.5} parent=1 // pred_fallthru
      _
    %v36 = vld [vmem:[#allocation2] sm:$0xff]
    %v37 = vld [vmem:[#allocation2 + $0x8] sm:$0xff]
    %v38 = vld [vmem:[#allocation2 + $0x10] sm:$0xff]
    %v39 = vld [vmem:[#allocation2 + $0x18] sm:$0xff]
    %v40 = vld [vmem:[#allocation2 + $0x20] sm:$0xff]
    %v41 = vld [vmem:[#allocation2 + $0x28] sm:$0xff]
    %v42 = vld [vmem:[#allocation2 + $0x30] sm:$0xff]
    %v43 = vld [vmem:[#allocation2 + $0x38] sm:$0xff]
    %v44 = vld [vmem:[#allocation2 + $0x40] sm:$0xff]
    %v45 = vld [vmem:[#allocation2 + $0x48] sm:$0xff]
    %v46 = vld [vmem:[#allocation2 + $0x50] sm:$0xff]
    %v47 = vld [vmem:[#allocation2 + $0x58] sm:$0xff]
    %v48 = vld [vmem:[#allocation2 + $0x60] sm:$0xff]
    %v49 = vld [vmem:[#allocation2 + $0x68] sm:$0xff]
    %v50 = vld [vmem:[#allocation2 + $0x70] sm:$0xff]
    %v51 = vld [vmem:[#allocation2 + $0x78] sm:$0xff]
    %v52 = vld [vmem:[%s0] sm:$0xff]
    %v53 = vld [vmem:[%s0 + $0x8] sm:$0xff]
    %v54 = vld [vmem:[%s0 + $0x10] sm:$0xff]
    %v55 = vld [vmem:[%s0 + $0x18] sm:$0xff]
    %v56 = vld [vmem:[%s0 + $0x20] sm:$0xff]
    %v57 = vld [vmem:[%s0 + $0x28] sm:$0xff]
    %v58 = vld [vmem:[%s0 + $0x30] sm:$0xff]
    %v59 = vld [vmem:[%s0 + $0x38] sm:$0xff]
    %v60 = vld [vmem:[%s0 + $0x40] sm:$0xff]
    %v61 = vld [vmem:[%s0 + $0x48] sm:$0xff]
    %v62 = vld [vmem:[%s0 + $0x50] sm:$0xff]
    %v63 = vld [vmem:[%s0 + $0x58] sm:$0xff]
    %v64 = vld [vmem:[%s0 + $0x60] sm:$0xff]
    %v65 = vld [vmem:[%s0 + $0x68] sm:$0xff]
    %v66 = vld [vmem:[%s0 + $0x70] sm:$0xff]
    %v67 = vld [vmem:[%s0 + $0x78] sm:$0xff]
    %v68 = vld [vmem:[%s1] sm:$0xff]
    %v69 = vld [vmem:[%s1 + $0x8] sm:$0xff]
    %v70 = vld [vmem:[%s1 + $0x10] sm:$0xff]
    %v71 = vld [vmem:[%s1 + $0x18] sm:$0xff]
    %vm72 = vcmask 261120
    %v74 = vsel %vm72, %v52, 0
    %v77 = vsel %vm72, %v53, 0
    %v80 = vsel %vm72, %v54, 0
    %v83 = vsel %vm72, %v55, 0
    %v86 = vsel %vm72, %v56, 0
    %v89 = vsel %vm72, %v57, 0
    %v92 = vsel %vm72, %v58, 0
    %v95 = vsel %vm72, %v59, 0
    %v98 = vsel %vm72, %v60, 0
    %v101 = vsel %vm72, %v61, 0
    %v104 = vsel %vm72, %v62, 0
    %v107 = vsel %vm72, %v63, 0
    %v110 = vsel %vm72, %v64, 0
    %v113 = vsel %vm72, %v65, 0
    %v116 = vsel %vm72, %v66, 0
    %v119 = vsel %vm72, %v67, 0
    %121 = vmatprep.subr.mxu0 0.0
    %122 = vmatpush1.msra.mxu0 0.0
    %123 = vmatprep.subr.mxu0 0.0
    %124 = vmatpush1.msra.mxu0 0.0
    %125 = vmatprep.subr.mxu0 0.0
    %126 = vmatpush1.msra.mxu0 0.0
    %127 = vmatprep.subr.mxu0 0.0
    %128 = vmatpush1.msra.mxu0 0.0
    %129 = vmatprep.subr.mxu0 0.0
    %130 = vmatpush1.msra.mxu0 0.0
    %131 = vmatprep.subr.mxu0 0.0
    %132 = vmatpush1.msra.mxu0 0.0
    %133 = vmatprep.subr.mxu0 0.0
    %134 = vmatpush1.msra.mxu0 0.0
    %135 = vmatprep.subr.mxu0 0.0
    %136 = vmatpush1.msra.mxu0 0.0
    %137 = vmatprep.subr.mxu0 0.0
    %138 = vmatpush1.msra.mxu0 0.0
    %139 = vmatprep.subr.mxu0 0.0
    %140 = vmatpush1.msra.mxu0 0.0
    %141 = vmatprep.subr.mxu0 0.0
    %142 = vmatpush1.msra.mxu0 0.0
    %143 = vmatprep.subr.mxu0 0.0
    %144 = vmatpush1.msra.mxu0 0.0
    %145 = vmatprep.subr.mxu0 0.0
    %146 = vmatpush1.msra.mxu0 %v71
    %147 = vmatprep.subr.mxu0 0.0
    %148 = vmatpush1.msra.mxu0 %v70
    %149 = vmatprep.subr.mxu0 0.0
    %150 = vmatpush1.msra.mxu0 %v69
    %151 = vmatprep.subr.mxu0 0.0
    %152 = vmatpush1.msra.mxu0 %v68
    %153 = vmatprep.subr.mxu0 0.0
    %154 = vmatpush2.msra.mxu0 0.0
    %155 = vmatprep.subr.mxu0 0.0
    %156 = vmatpush2.msra.mxu0 0.0
    %157 = vmatprep.subr.mxu0 0.0
    %158 = vmatpush2.msra.mxu0 0.0
    %159 = vmatprep.subr.mxu0 0.0
    %160 = vmatpush2.msra.mxu0 0.0
    %161 = vmatprep.subr.mxu0 0.0
    %162 = vmatpush2.msra.mxu0 0.0
    %163 = vmatprep.subr.mxu0 0.0
    %164 = vmatpush2.msra.mxu0 0.0
    %165 = vmatprep.subr.mxu0 0.0
    %166 = vmatpush2.msra.mxu0 0.0
    %167 = vmatprep.subr.mxu0 0.0
    %168 = vmatpush2.msra.mxu0 0.0
    %169 = vmatprep.subr.mxu0 0.0
    %170 = vmatpush2.msra.mxu0 0.0
    %171 = vmatprep.subr.mxu0 0.0
    %172 = vmatpush2.msra.mxu0 0.0
    %173 = vmatprep.subr.mxu0 0.0
    %174 = vmatpush2.msra.mxu0 0.0
    %175 = vmatprep.subr.mxu0 0.0
    %176 = vmatpush2.msra.mxu0 0.0
    %177 = vmatprep.subr.mxu0 0.0
    %178 = vmatpush2.msra.mxu0 0.0
    %179 = vmatprep.subr.mxu0 0.0
    %180 = vmatpush2.msra.mxu0 0.0
    %181 = vmatprep.subr.mxu0 0.0
    %182 = vmatpush2.msra.mxu0 0.0
    %183 = vmatprep.subr.mxu0 0.0
    %184 = vmatpush2.msra.mxu0 0.0
    %185 = vmatprep.mubr.f32.mxu0 0.0
    %186 = vmatmul.mubr.f32.gmra.mxu0 %v74
    %v187 = vpop.f32.mrf.mxu0
    %v188 = vadd.f32 0.0, %v187
    %v189 = vpop.f32.mrf.mxu0
    %190 = vmatprep.mubr.f32.mxu0 0.0
    %191 = vmatmul.mubr.f32.gmra.mxu0 %v77
    %v192 = vpop.f32.mrf.mxu0
    %v193 = vadd.f32 0.0, %v192
    %v194 = vpop.f32.mrf.mxu0
    %195 = vmatprep.mubr.f32.mxu0 0.0
    %196 = vmatmul.mubr.f32.gmra.mxu0 %v80
    %v197 = vpop.f32.mrf.mxu0
    %v198 = vadd.f32 0.0, %v197
    %v199 = vpop.f32.mrf.mxu0
    %200 = vmatprep.mubr.f32.mxu0 0.0
    %201 = vmatmul.mubr.f32.gmra.mxu0 %v83
    %v202 = vpop.f32.mrf.mxu0
    %v203 = vadd.f32 0.0, %v202
    %v204 = vpop.f32.mrf.mxu0
    %205 = vmatprep.mubr.f32.mxu0 0.0
    %206 = vmatmul.mubr.f32.gmra.mxu0 %v86
    %v207 = vpop.f32.mrf.mxu0
    %v208 = vadd.f32 0.0, %v207
    %v209 = vpop.f32.mrf.mxu0
    %210 = vmatprep.mubr.f32.mxu0 0.0
    %211 = vmatmul.mubr.f32.gmra.mxu0 %v89
    %v212 = vpop.f32.mrf.mxu0
    %v213 = vadd.f32 0.0, %v212
    %v214 = vpop.f32.mrf.mxu0
    %215 = vmatprep.mubr.f32.mxu0 0.0
    %216 = vmatmul.mubr.f32.gmra.mxu0 %v92
    %v217 = vpop.f32.mrf.mxu0
    %v218 = vadd.f32 0.0, %v217
    %v219 = vpop.f32.mrf.mxu0
    %220 = vmatprep.mubr.f32.mxu0 0.0
    %221 = vmatmul.mubr.f32.gmra.mxu0 %v95
    %v222 = vpop.f32.mrf.mxu0
    %v223 = vadd.f32 0.0, %v222
    %v224 = vpop.f32.mrf.mxu0
    %225 = vmatprep.mubr.f32.mxu0 0.0
    %226 = vmatmul.mubr.f32.gmra.mxu0 %v98
    %v227 = vpop.f32.mrf.mxu0
    %v228 = vadd.f32 0.0, %v227
    %v229 = vpop.f32.mrf.mxu0
    %230 = vmatprep.mubr.f32.mxu0 0.0
    %231 = vmatmul.mubr.f32.gmra.mxu0 %v101
    %v232 = vpop.f32.mrf.mxu0
    %v233 = vadd.f32 0.0, %v232
    %v234 = vpop.f32.mrf.mxu0
    %235 = vmatprep.mubr.f32.mxu0 0.0
    %236 = vmatmul.mubr.f32.gmra.mxu0 %v104
    %v237 = vpop.f32.mrf.mxu0
    %v238 = vadd.f32 0.0, %v237
    %v239 = vpop.f32.mrf.mxu0
    %240 = vmatprep.mubr.f32.mxu0 0.0
    %241 = vmatmul.mubr.f32.gmra.mxu0 %v107
    %v242 = vpop.f32.mrf.mxu0
    %v243 = vadd.f32 0.0, %v242
    %v244 = vpop.f32.mrf.mxu0
    %245 = vmatprep.mubr.f32.mxu0 0.0
    %246 = vmatmul.mubr.f32.gmra.mxu0 %v110
    %v247 = vpop.f32.mrf.mxu0
    %v248 = vadd.f32 0.0, %v247
    %v249 = vpop.f32.mrf.mxu0
    %250 = vmatprep.mubr.f32.mxu0 0.0
    %251 = vmatmul.mubr.f32.gmra.mxu0 %v113
    %v252 = vpop.f32.mrf.mxu0
    %v253 = vadd.f32 0.0, %v252
    %v254 = vpop.f32.mrf.mxu0
    %255 = vmatprep.mubr.f32.mxu0 0.0
    %256 = vmatmul.mubr.f32.gmra.mxu0 %v116
    %v257 = vpop.f32.mrf.mxu0
    %v258 = vadd.f32 0.0, %v257
    %v259 = vpop.f32.mrf.mxu0
    %260 = vmatprep.mubr.f32.mxu0 0.0
    %261 = vmatmul.mubr.f32.gmra.mxu0 %v119
    %v262 = vpop.f32.mrf.mxu0
    %v263 = vadd.f32 0.0, %v262
    %v264 = vpop.f32.mrf.mxu0
    %265 = vdwg.mxu0
    %v266 = vadd.f32 %v36, %v188
    %v267 = vadd.f32 %v37, %v193
    %v268 = vadd.f32 %v38, %v198
    %v269 = vadd.f32 %v39, %v203
    %v270 = vadd.f32 %v40, %v208
    %v271 = vadd.f32 %v41, %v213
    %v272 = vadd.f32 %v42, %v218
    %v273 = vadd.f32 %v43, %v223
    %v274 = vadd.f32 %v44, %v228
    %v275 = vadd.f32 %v45, %v233
    %v276 = vadd.f32 %v46, %v238
    %v277 = vadd.f32 %v47, %v243
    %v278 = vadd.f32 %v48, %v248
    %v279 = vadd.f32 %v49, %v253
    %v280 = vadd.f32 %v50, %v258
    %v281 = vadd.f32 %v51, %v263
    %282 = vst.msk [vmem:[#allocation2] sm:$0xff] %vm72, %v266
    %283 = vst.msk [vmem:[#allocation2 + $0x8] sm:$0xff] %vm72, %v267
    %284 = vst.msk [vmem:[#allocation2 + $0x10] sm:$0xff] %vm72, %v268
    %285 = vst.msk [vmem:[#allocation2 + $0x18] sm:$0xff] %vm72, %v269
    %286 = vst.msk [vmem:[#allocation2 + $0x20] sm:$0xff] %vm72, %v270
    %287 = vst.msk [vmem:[#allocation2 + $0x28] sm:$0xff] %vm72, %v271
    %288 = vst.msk [vmem:[#allocation2 + $0x30] sm:$0xff] %vm72, %v272
    %289 = vst.msk [vmem:[#allocation2 + $0x38] sm:$0xff] %vm72, %v273
    %290 = vst.msk [vmem:[#allocation2 + $0x40] sm:$0xff] %vm72, %v274
    %291 = vst.msk [vmem:[#allocation2 + $0x48] sm:$0xff] %vm72, %v275
    %292 = vst.msk [vmem:[#allocation2 + $0x50] sm:$0xff] %vm72, %v276
    %293 = vst.msk [vmem:[#allocation2 + $0x58] sm:$0xff] %vm72, %v277
    %294 = vst.msk [vmem:[#allocation2 + $0x60] sm:$0xff] %vm72, %v278
    %295 = vst.msk [vmem:[#allocation2 + $0x68] sm:$0xff] %vm72, %v279
    %296 = vst.msk [vmem:[#allocation2 + $0x70] sm:$0xff] %vm72, %v280
    %297 = vst.msk [vmem:[#allocation2 + $0x78] sm:$0xff] %vm72, %v281
    // Predicated region
    $region18: #{qkv_attention_forward.5} parent=1 // pred_check
      %p298 = pneg %p15
    $region19: #{qkv_attention_forward.5} parent=1 // pred_check_branch
      %300 = sbr.rel (%p298) target = $region21
    $region20: #{qkv_attention_forward.5} parent=1 // pred_region
      %v301 = vld [vmem:[#allocation2] sm:$0xff]
      %v302 = vld [vmem:[#allocation2 + $0x8] sm:$0xff]
      %v303 = vld [vmem:[#allocation2 + $0x10] sm:$0xff]
      %v304 = vld [vmem:[#allocation2 + $0x18] sm:$0xff]
      %v305 = vld [vmem:[#allocation2 + $0x20] sm:$0xff]
      %v306 = vld [vmem:[#allocation2 + $0x28] sm:$0xff]
      %v307 = vld [vmem:[#allocation2 + $0x30] sm:$0xff]
      %v308 = vld [vmem:[#allocation2 + $0x38] sm:$0xff]
      %v309 = vld [vmem:[#allocation2 + $0x40] sm:$0xff]
      %v310 = vld [vmem:[#allocation2 + $0x48] sm:$0xff]
      %v311 = vld [vmem:[#allocation2 + $0x50] sm:$0xff]
      %v312 = vld [vmem:[#allocation2 + $0x58] sm:$0xff]
      %v313 = vld [vmem:[#allocation2 + $0x60] sm:$0xff]
      %v314 = vld [vmem:[#allocation2 + $0x68] sm:$0xff]
      %v315 = vld [vmem:[#allocation2 + $0x70] sm:$0xff]
      %v316 = vld [vmem:[#allocation2 + $0x78] sm:$0xff]
      %v317 = vld [vmem:[%s2] sm:$0x1]
      %v319 = vlaneseq
      %v320 = vshrl.u32 %v319, 7
      %v321 = vsub.s32 0, %v320
      %v322 = vrot.slane %v317, %v321
      %v324 = vadd.f32 %v301, %v322
      %v325 = vadd.f32 %v302, %v322
      %v326 = vadd.f32 %v303, %v322
      %v327 = vadd.f32 %v304, %v322
      %v328 = vadd.f32 %v305, %v322
      %v329 = vadd.f32 %v306, %v322
      %v330 = vadd.f32 %v307, %v322
      %v331 = vadd.f32 %v308, %v322
      %v332 = vadd.f32 %v309, %v322
      %v333 = vadd.f32 %v310, %v322
      %v334 = vadd.f32 %v311, %v322
      %v335 = vadd.f32 %v312, %v322
      %v336 = vadd.f32 %v313, %v322
      %v337 = vadd.f32 %v314, %v322
      %v338 = vadd.f32 %v315, %v322
      %v339 = vadd.f32 %v316, %v322
      %340 = vst.msk [vmem:[#allocation3] sm:$0xff] %vm72, %v324
      %341 = vst.msk [vmem:[#allocation3 + $0x8] sm:$0xff] %vm72, %v325
      %342 = vst.msk [vmem:[#allocation3 + $0x10] sm:$0xff] %vm72, %v326
      %343 = vst.msk [vmem:[#allocation3 + $0x18] sm:$0xff] %vm72, %v327
      %344 = vst.msk [vmem:[#allocation3 + $0x20] sm:$0xff] %vm72, %v328
      %345 = vst.msk [vmem:[#allocation3 + $0x28] sm:$0xff] %vm72, %v329
      %346 = vst.msk [vmem:[#allocation3 + $0x30] sm:$0xff] %vm72, %v330
      %347 = vst.msk [vmem:[#allocation3 + $0x38] sm:$0xff] %vm72, %v331
      %348 = vst.msk [vmem:[#allocation3 + $0x40] sm:$0xff] %vm72, %v332
      %349 = vst.msk [vmem:[#allocation3 + $0x48] sm:$0xff] %vm72, %v333
      %350 = vst.msk [vmem:[#allocation3 + $0x50] sm:$0xff] %vm72, %v334
      %351 = vst.msk [vmem:[#allocation3 + $0x58] sm:$0xff] %vm72, %v335
      %352 = vst.msk [vmem:[#allocation3 + $0x60] sm:$0xff] %vm72, %v336
      %353 = vst.msk [vmem:[#allocation3 + $0x68] sm:$0xff] %vm72, %v337
      %354 = vst.msk [vmem:[#allocation3 + $0x70] sm:$0xff] %vm72, %v338
      %355 = vst.msk [vmem:[#allocation3 + $0x78] sm:$0xff] %vm72, %v339
    $region21: #{qkv_attention_forward.5} parent=1 // pred_fallthru
      _
    // Predicated region
    $region22: #{qkv_attention_forward.5} parent=1 // pred_check
      _
    $region23: #{qkv_attention_forward.5} parent=1 // pred_check_branch
      %357 = sbr.rel (0) target = $region25
    $region24: #{qkv_attention_forward.5} parent=1 // pred_region
      %s359 = ssub.s32 2048, 2048
      %360 = vsyncadd [#allocation4], %s359
      %s361 = sshll.u32 [#allocation3], 4
      %s362 = int_to_ptr.vmem [resolvable:$true] %s361
      %367 = dma.vmem_to_hbm [thread:$0]  %s362, 2048, %s3, [#allocation4], 128, 128, 8
    $region25: #{qkv_attention_forward.5} parent=1 // pred_fallthru
      _
    // Predicated region
    $region26: #{qkv_attention_forward.5} parent=1 // pred_check
      _
    $region27: #{qkv_attention_forward.5} parent=1 // pred_check_branch
      %369 = sbr.rel (0) target = $region29
    $region28: #{qkv_attention_forward.5} parent=1 // pred_region
      %370 = dma.done [#allocation4], 2048
    $region29: #{qkv_attention_forward.5} parent=1 // pred_fallthru
      _
    %371 = vsyncpa [#allocation4], 1

// kernel: qkv_attention_forward.4
$region0: #{qkv_attention_forward.4}
  #allocation0 [shape = 'u32[]', space=smem, size = 0x4, offset = 0x4, fixed_abs, tag = 'smem constant byte address 0x4 - core index']
  #allocation1 [shape = 'u32[144,128]{1,0:T(1,128)}', space=vmem, size = 0x12000, scoped, tag = 'internal scratch']
  %s0 = inlined_call_operand.vmem [shape: f32[2,64,96], index: 0, kind: input, shape index: {}]
  %s1 = inlined_call_operand.vmem [shape: f32[2,64,32], index: 1, kind: output, shape index: {}]
  %s2 = sld [smem:[#allocation0]]
  $region37: #{qkv_attention_forward.4} parent=0
    _
  %s4 = ssub.s32 1, %s2
  %s5 = scalar_select 0, %s4, %s2
  loop: start=0, step=1, limit=4
  $region2: #{qkv_attention_forward.4} parent=0 // loop_pre_header
    _
  $region3: #{qkv_attention_forward.4} parent=0 // loop_header
    %s7 = sphi 0, %s11
    %p8 = scmp.ge.s32.totalorder %s7, 4
    %s17 = sphi 0, %s19
    %s20 = sphi 0, %s17
    %s21 = sphi 0, %s20
    %s37 = sphi 0, %s21
    %s43 = sphi 0, %s45
    %s46 = sphi 0, %s43
    %s47 = sphi 0, %s46
    %s63 = sphi 0, %s47
  $region4: #{qkv_attention_forward.4} parent=0 // loop_header_branch
    %10 = sbr.rel (%p8) target = $region8
  $region5: #{qkv_attention_forward.4} parent=0 // loop_body
    %s12 = ssub.s32 %s7, 1
    %s13 = ssub.s32 %s7, 2
    %s14 = sadd.s32 %s7, 1
    %s15 = ssub.s32 %s7, %s14
    %p16 = scmp.eq.s32.totalorder %s15, 0
    %s18 = sadd.s32 %s17, 1
    %s19 = scalar_select %p16, %s17, %s18
    %p22 = pneg %p16
    %p23 = scmp.eq.s32.totalorder %s7, 1
    %p24 = por %p22, %p23
    %p25 = scmp.ne.s32.totalorder %s17, %s20
    %p26 = scmp.eq.s32.totalorder %s7, 0
    %p27 = por %p25, %p26
    %p28 = scmp.ne.s32.totalorder %s17, %s20
    %p29 = scmp.eq.s32.totalorder %s12, 1
    %p30 = por %p28, %p29
    %p31 = scmp.ne.s32.totalorder %s20, %s21
    %p32 = scmp.eq.s32.totalorder %s12, 0
    %p33 = por %p31, %p32
    %p34 = scmp.ne.s32.totalorder %s20, %s21
    %p35 = scmp.eq.s32.totalorder %s13, 1
    %p36 = por %p34, %p35
    %p38 = scmp.ne.s32.totalorder %s21, %s37
    %p39 = scmp.eq.s32.totalorder %s13, 0
    %p40 = por %p38, %p39
    %s41 = ssub.s32 %s7, %s14
    %p42 = scmp.eq.s32.totalorder %s41, 0
    %s44 = sadd.s32 %s43, 1
    %s45 = scalar_select %p42, %s43, %s44
    %p48 = pneg %p42
    %p49 = scmp.eq.s32.totalorder %s7, 1
    %p50 = por %p48, %p49
    %p51 = scmp.ne.s32.totalorder %s43, %s46
    %p52 = scmp.eq.s32.totalorder %s7, 0
    %p53 = por %p51, %p52
    %p54 = scmp.ne.s32.totalorder %s43, %s46
    %p55 = scmp.eq.s32.totalorder %s12, 1
    %p56 = por %p54, %p55
    %p57 = scmp.ne.s32.totalorder %s46, %s47
    %p58 = scmp.eq.s32.totalorder %s12, 0
    %p59 = por %p57, %p58
    %p60 = scmp.ne.s32.totalorder %s46, %s47
    %p61 = scmp.eq.s32.totalorder %s13, 1
    %p62 = por %p60, %p61
    %p64 = scmp.ne.s32.totalorder %s47, %s63
    %p65 = scmp.eq.s32.totalorder %s13, 0
    %p66 = por %p64, %p65
    %p67 = scmp.le.s32.totalorder 1, %s7
    %p68 = scmp.lt.s32.totalorder %s7, 3
    %p69 = pnand %p67, %p68
    %p70 = pneg %p69
    // Predicated region
    $region9: #{qkv_attention_forward.4} parent=5 // pred_check
      _
    $region10: #{qkv_attention_forward.4} parent=5 // pred_check_branch
      %72 = sbr.rel (%p69) target = $region12
    $region11: #{qkv_attention_forward.4} parent=5 // pred_region
      %s73 = ssub.s32 %s7, 1
    $region12: #{qkv_attention_forward.4} parent=5 // pred_fallthru
      _
    %p74 = scmp.lt.s32.totalorder %s7, 2
    // Predicated region
    $region13: #{qkv_attention_forward.4} parent=5 // pred_check
      %p75 = pneg %p74
    $region14: #{qkv_attention_forward.4} parent=5 // pred_check_branch
      %77 = sbr.rel (%p75) target = $region16
    $region15: #{qkv_attention_forward.4} parent=5 // pred_region
      // Predicated region
      $region17: #{qkv_attention_forward.4} parent=15 // pred_check
        %p78 = pneg %p27
      $region18: #{qkv_attention_forward.4} parent=15 // pred_check_branch
        %80 = sbr.rel (%p78) target = $region20
      $region19: #{qkv_attention_forward.4} parent=15 // pred_region
        %p81 = scmp.lt.s32.totalorder %s7, 1
        %s82 = scalar_select %p81, %s7, 1
        %s83 = smul.addr %s82, 8
        %s84 = smul.addr %s83, 8
        %s85 = scalar_lea.vmem %s0, %s84
      $region20: #{qkv_attention_forward.4} parent=15 // pred_fallthru
        _
    $region16: #{qkv_attention_forward.4} parent=5 // pred_fallthru
      _
    %p86 = scmp.le.s32.totalorder 1, %s7
    %p87 = scmp.lt.s32.totalorder %s7, 3
    %p88 = pnand %p86, %p87
    %p89 = pneg %p88
    // Predicated region
    $region21: #{qkv_attention_forward.4} parent=5 // pred_check
      _
    $region22: #{qkv_attention_forward.4} parent=5 // pred_check_branch
      %91 = sbr.rel (%p88) target = $region24
    $region23: #{qkv_attention_forward.4} parent=5 // pred_region
      %s92 = ssub.s32 %s7, 1
      %p93 = scmp.lt.s32.totalorder %s12, 1
      %s94 = scalar_select %p93, %s12, 1
      %s95 = smul.addr %s94, 8
      %s96 = smul.addr %s95, 8
      %s97 = scalar_lea.vmem %s0, %s96
      %p98 = pneg %p33
      %p99 = pneg %p30
      %p100 = pneg %p59
      %p101 = pneg %p56
      %p102 = scmp.lt.s32.totalorder %s12, 1
      %s103 = scalar_select %p102, %s12, 1
      %s104 = smul.addr %s103, 8
      %s105 = smul.addr %s104, 8
      %s106 = scalar_lea.vmem %s1, %s105
      %p107 = scmp.lt.s32.totalorder %s12, 1
      %s108 = scalar_select %p107, %s12, 1
      %s109 = smul.addr %s108, 8
      %s110 = smul.addr %s109, 8
      %s111 = scalar_lea.vmem %s0, %s110
      %p112 = scmp.lt.s32.totalorder %s12, 1
      %s113 = scalar_select %p112, %s12, 1
      %s114 = smul.addr %s113, 8
      %s115 = smul.addr %s114, 8
      %s116 = scalar_lea.vmem %s1, %s115
      %v117 = vld [vmem:[%s111] sm:$0xff]
      %v118 = vld [vmem:[%s111 + $0x8] sm:$0xff]
      %v119 = vld [vmem:[%s111 + $0x10] sm:$0xff]
      %v120 = vld [vmem:[%s111 + $0x18] sm:$0xff]
      %v121 = vld [vmem:[%s111 + $0x20] sm:$0xff]
      %v122 = vld [vmem:[%s111 + $0x28] sm:$0xff]
      %v123 = vld [vmem:[%s111 + $0x30] sm:$0xff]
      %v124 = vld [vmem:[%s111 + $0x38] sm:$0xff]
      %v125 = vmul.f32 %v117, 0.35355338
      %v126 = vmul.f32 %v118, 0.35355338
      %v127 = vmul.f32 %v119, 0.35355338
      %v128 = vmul.f32 %v120, 0.35355338
      %v129 = vmul.f32 %v121, 0.35355338
      %v130 = vmul.f32 %v122, 0.35355338
      %v131 = vmul.f32 %v123, 0.35355338
      %v132 = vmul.f32 %v124, 0.35355338
      %141 = vrot.lane.b32.xlu0 %v117, 96
      %v142 = vpop.permute.xlu0 %141
      %143 = vrot.lane.b32.xlu0 %v118, 96
      %v144 = vpop.permute.xlu0 %143
      %145 = vrot.lane.b32.xlu0 %v119, 96
      %v146 = vpop.permute.xlu0 %145
      %147 = vrot.lane.b32.xlu0 %v120, 96
      %v148 = vpop.permute.xlu0 %147
      %149 = vrot.lane.b32.xlu0 %v121, 96
      %v150 = vpop.permute.xlu0 %149
      %151 = vrot.lane.b32.xlu0 %v122, 96
      %v152 = vpop.permute.xlu0 %151
      %153 = vrot.lane.b32.xlu0 %v123, 96
      %v154 = vpop.permute.xlu0 %153
      %155 = vrot.lane.b32.xlu0 %v124, 96
      %v156 = vpop.permute.xlu0 %155
      %vm157 = vcmask 64512
      %v159 = vsel %vm157, %v125, 0
      %v162 = vsel %vm157, %v126, 0
      %v165 = vsel %vm157, %v127, 0
      %v168 = vsel %vm157, %v128, 0
      %v171 = vsel %vm157, %v129, 0
      %v174 = vsel %vm157, %v130, 0
      %v177 = vsel %vm157, %v131, 0
      %v180 = vsel %vm157, %v132, 0
      %v182 = vsel %vm157, %v142, 0
      %v184 = vsel %vm157, %v144, 0
      %v186 = vsel %vm157, %v146, 0
      %v188 = vsel %vm157, %v148, 0
      %v190 = vsel %vm157, %v150, 0
      %v192 = vsel %vm157, %v152, 0
      %v194 = vsel %vm157, %v154, 0
      %v196 = vsel %vm157, %v156, 0
      %198 = vmatprep.subr.mxu0 0.0
      %199 = vmatpush1.xpose.msra.mxu0 0.0
      %200 = vmatprep.subr.mxu0 0.0
      %201 = vmatpush1.xpose.msra.mxu0 0.0
      %202 = vmatprep.subr.mxu0 0.0
      %203 = vmatpush1.xpose.msra.mxu0 0.0
      %204 = vmatprep.subr.mxu0 0.0
      %205 = vmatpush1.xpose.msra.mxu0 0.0
      %206 = vmatprep.subr.mxu0 0.0
      %207 = vmatpush1.xpose.msra.mxu0 0.0
      %208 = vmatprep.subr.mxu0 0.0
      %209 = vmatpush1.xpose.msra.mxu0 0.0
      %210 = vmatprep.subr.mxu0 0.0
      %211 = vmatpush1.xpose.msra.mxu0 0.0
      %212 = vmatprep.subr.mxu0 0.0
      %213 = vmatpush1.xpose.msra.mxu0 0.0
      %214 = vmatprep.subr.mxu0 0.0
      %215 = vmatpush1.xpose.msra.mxu0 %v196
      %216 = vmatprep.subr.mxu0 0.0
      %217 = vmatpush1.xpose.msra.mxu0 %v194
      %218 = vmatprep.subr.mxu0 0.0
      %219 = vmatpush1.xpose.msra.mxu0 %v192
      %220 = vmatprep.subr.mxu0 0.0
      %221 = vmatpush1.xpose.msra.mxu0 %v190
      %222 = vmatprep.subr.mxu0 0.0
      %223 = vmatpush1.xpose.msra.mxu0 %v188
      %224 = vmatprep.subr.mxu0 0.0
      %225 = vmatpush1.xpose.msra.mxu0 %v186
      %226 = vmatprep.subr.mxu0 0.0
      %227 = vmatpush1.xpose.msra.mxu0 %v184
      %228 = vmatprep.subr.mxu0 0.0
      %229 = vmatpush1.xpose.msra.mxu0 %v182
      %230 = vmatprep.subr.mxu0 0.0
      %231 = vmatpush2.xpose.msra.mxu0 0.0
      %232 = vmatprep.subr.mxu0 0.0
      %233 = vmatpush2.xpose.msra.mxu0 0.0
      %234 = vmatprep.subr.mxu0 0.0
      %235 = vmatpush2.xpose.msra.mxu0 0.0
      %236 = vmatprep.subr.mxu0 0.0
      %237 = vmatpush2.xpose.msra.mxu0 0.0
      %238 = vmatprep.subr.mxu0 0.0
      %239 = vmatpush2.xpose.msra.mxu0 0.0
      %240 = vmatprep.subr.mxu0 0.0
      %241 = vmatpush2.xpose.msra.mxu0 0.0
      %242 = vmatprep.subr.mxu0 0.0
      %243 = vmatpush2.xpose.msra.mxu0 0.0
      %244 = vmatprep.subr.mxu0 0.0
      %245 = vmatpush2.xpose.msra.mxu0 0.0
      %246 = vmatprep.subr.mxu0 0.0
      %247 = vmatpush2.xpose.msra.mxu0 0.0
      %248 = vmatprep.subr.mxu0 0.0
      %249 = vmatpush2.xpose.msra.mxu0 0.0
      %250 = vmatprep.subr.mxu0 0.0
      %251 = vmatpush2.xpose.msra.mxu0 0.0
      %252 = vmatprep.subr.mxu0 0.0
      %253 = vmatpush2.xpose.msra.mxu0 0.0
      %254 = vmatprep.subr.mxu0 0.0
      %255 = vmatpush2.xpose.msra.mxu0 0.0
      %256 = vmatprep.subr.mxu0 0.0
      %257 = vmatpush2.xpose.msra.mxu0 0.0
      %258 = vmatprep.subr.mxu0 0.0
      %259 = vmatpush2.xpose.msra.mxu0 0.0
      %260 = vmatprep.subr.mxu0 0.0
      %261 = vmatpush2.xpose.msra.mxu0 0.0
      %262 = vmatprep.mubr.f32.mxu0 0.0
      %263 = vmatmul.mubr.f32.gmra.mxu0 %v159
      %v264 = vpop.f32.mrf.mxu0
      %v265 = vadd.f32 0.0, %v264
      %v266 = vpop.f32.mrf.mxu0
      %267 = vmatprep.mubr.f32.mxu0 0.0
      %268 = vmatmul.mubr.f32.gmra.mxu0 %v162
      %v269 = vpop.f32.mrf.mxu0
      %v270 = vadd.f32 0.0, %v269
      %v271 = vpop.f32.mrf.mxu0
      %272 = vmatprep.mubr.f32.mxu0 0.0
      %273 = vmatmul.mubr.f32.gmra.mxu0 %v165
      %v274 = vpop.f32.mrf.mxu0
      %v275 = vadd.f32 0.0, %v274
      %v276 = vpop.f32.mrf.mxu0
      %277 = vmatprep.mubr.f32.mxu0 0.0
      %278 = vmatmul.mubr.f32.gmra.mxu0 %v168
      %v279 = vpop.f32.mrf.mxu0
      %v280 = vadd.f32 0.0, %v279
      %v281 = vpop.f32.mrf.mxu0
      %282 = vmatprep.mubr.f32.mxu0 0.0
      %283 = vmatmul.mubr.f32.gmra.mxu0 %v171
      %v284 = vpop.f32.mrf.mxu0
      %v285 = vadd.f32 0.0, %v284
      %v286 = vpop.f32.mrf.mxu0
      %287 = vmatprep.mubr.f32.mxu0 0.0
      %288 = vmatmul.mubr.f32.gmra.mxu0 %v174
      %v289 = vpop.f32.mrf.mxu0
      %v290 = vadd.f32 0.0, %v289
      %v291 = vpop.f32.mrf.mxu0
      %292 = vmatprep.mubr.f32.mxu0 0.0
      %293 = vmatmul.mubr.f32.gmra.mxu0 %v177
      %v294 = vpop.f32.mrf.mxu0
      %v295 = vadd.f32 0.0, %v294
      %v296 = vpop.f32.mrf.mxu0
      %297 = vmatprep.mubr.f32.mxu0 0.0
      %298 = vmatmul.mubr.f32.gmra.mxu0 %v180
      %v299 = vpop.f32.mrf.mxu0
      %v300 = vadd.f32 0.0, %v299
      %v301 = vpop.f32.mrf.mxu0
      %302 = vdwg.mxu0
      %vm303 = vcmask 523264
      %v304 = vsel %vm303, %v265, -inf
      %305 = vmax.xlane.f32.xlu0 %v304
      %v306 = vpop.xlane.xlu0 %305
      %v307 = vsel %vm303, %v270, -inf
      %308 = vmax.xlane.f32.xlu0 %v307
      %v309 = vpop.xlane.xlu0 %308
      %v310 = vsel %vm303, %v275, -inf
      %311 = vmax.xlane.f32.xlu0 %v310
      %v312 = vpop.xlane.xlu0 %311
      %v313 = vsel %vm303, %v280, -inf
      %314 = vmax.xlane.f32.xlu0 %v313
      %v315 = vpop.xlane.xlu0 %314
      %v316 = vsel %vm303, %v285, -inf
      %317 = vmax.xlane.f32.xlu0 %v316
      %v318 = vpop.xlane.xlu0 %317
      %v319 = vsel %vm303, %v290, -inf
      %320 = vmax.xlane.f32.xlu0 %v319
      %v321 = vpop.xlane.xlu0 %320
      %v322 = vsel %vm303, %v295, -inf
      %323 = vmax.xlane.f32.xlu0 %v322
      %v324 = vpop.xlane.xlu0 %323
      %v325 = vsel %vm303, %v300, -inf
      %326 = vmax.xlane.f32.xlu0 %v325
      %v327 = vpop.xlane.xlu0 %326
      %v328 = vsub.f32 %v265, %v306
      %v329 = vsub.f32 %v270, %v309
      %v330 = vsub.f32 %v275, %v312
      %v331 = vsub.f32 %v280, %v315
      %v332 = vsub.f32 %v285, %v318
      %v333 = vsub.f32 %v290, %v321
      %v334 = vsub.f32 %v295, %v324
      %v335 = vsub.f32 %v300, %v327
      %v336 = vmul.f32 %v328, 1.442695
      %v337 = vpow.pop %v336
      %v338 = vmul.f32 %v329, 1.442695
      %v339 = vpow.pop %v338
      %v340 = vmul.f32 %v330, 1.442695
      %v341 = vpow.pop %v340
      %v342 = vmul.f32 %v331, 1.442695
      %v343 = vpow.pop %v342
      %v344 = vmul.f32 %v332, 1.442695
      %v345 = vpow.pop %v344
      %v346 = vmul.f32 %v333, 1.442695
      %v347 = vpow.pop %v346
      %v348 = vmul.f32 %v334, 1.442695
      %v349 = vpow.pop %v348
      %v350 = vmul.f32 %v335, 1.442695
      %v351 = vpow.pop %v350
      %v352 = vsel %vm303, %v337, 0.0
      %353 = vadd.xlane.f32.xlu0 %v352
      %v354 = vpop.xlane.xlu0 %353
      %v355 = vsel %vm303, %v339, 0.0
      %356 = vadd.xlane.f32.xlu0 %v355
      %v357 = vpop.xlane.xlu0 %356
      %v358 = vsel %vm303, %v341, 0.0
      %359 = vadd.xlane.f32.xlu0 %v358
      %v360 = vpop.xlane.xlu0 %359
      %v361 = vsel %vm303, %v343, 0.0
      %362 = vadd.xlane.f32.xlu0 %v361
      %v363 = vpop.xlane.xlu0 %362
      %v364 = vsel %vm303, %v345, 0.0
      %365 = vadd.xlane.f32.xlu0 %v364
      %v366 = vpop.xlane.xlu0 %365
      %v367 = vsel %vm303, %v347, 0.0
      %368 = vadd.xlane.f32.xlu0 %v367
      %v369 = vpop.xlane.xlu0 %368
      %v370 = vsel %vm303, %v349, 0.0
      %371 = vadd.xlane.f32.xlu0 %v370
      %v372 = vpop.xlane.xlu0 %371
      %v373 = vsel %vm303, %v351, 0.0
      %374 = vadd.xlane.f32.xlu0 %v373
      %v375 = vpop.xlane.xlu0 %374
      %v376 = vrcp.pop %v354
      %v377 = vrcp.pop %v357
      %v378 = vrcp.pop %v360
      %v379 = vrcp.pop %v363
      %v380 = vrcp.pop %v366
      %v381 = vrcp.pop %v369
      %v382 = vrcp.pop %v372
      %v383 = vrcp.pop %v375
      %v384 = vmul.f32 %v337, %v376
      %v385 = vmul.f32 %v339, %v377
      %v386 = vmul.f32 %v341, %v378
      %v387 = vmul.f32 %v343, %v379
      %v388 = vmul.f32 %v345, %v380
      %v389 = vmul.f32 %v347, %v381
      %v390 = vmul.f32 %v349, %v382
      %v391 = vmul.f32 %v351, %v383
      %392 = vrot.lane.b32.xlu0 %v117, 64
      %v393 = vpop.permute.xlu0 %392
      %394 = vrot.lane.b32.xlu0 %v118, 64
      %v395 = vpop.permute.xlu0 %394
      %396 = vrot.lane.b32.xlu0 %v119, 64
      %v397 = vpop.permute.xlu0 %396
      %398 = vrot.lane.b32.xlu0 %v120, 64
      %v399 = vpop.permute.xlu0 %398
      %400 = vrot.lane.b32.xlu0 %v121, 64
      %v401 = vpop.permute.xlu0 %400
      %402 = vrot.lane.b32.xlu0 %v122, 64
      %v403 = vpop.permute.xlu0 %402
      %404 = vrot.lane.b32.xlu0 %v123, 64
      %v405 = vpop.permute.xlu0 %404
      %406 = vrot.lane.b32.xlu0 %v124, 64
      %v407 = vpop.permute.xlu0 %406
      %v417 = vsel %vm303, %v384, 0
      %v420 = vsel %vm303, %v385, 0
      %v423 = vsel %vm303, %v386, 0
      %v426 = vsel %vm303, %v387, 0
      %v429 = vsel %vm303, %v388, 0
      %v432 = vsel %vm303, %v389, 0
      %v435 = vsel %vm303, %v390, 0
      %v438 = vsel %vm303, %v391, 0
      %440 = vmatprep.subr.mxu0 0.0
      %441 = vmatpush1.msra.mxu0 0.0
      %442 = vmatprep.subr.mxu0 0.0
      %443 = vmatpush1.msra.mxu0 0.0
      %444 = vmatprep.subr.mxu0 0.0
      %445 = vmatpush1.msra.mxu0 0.0
      %446 = vmatprep.subr.mxu0 0.0
      %447 = vmatpush1.msra.mxu0 0.0
      %448 = vmatprep.subr.mxu0 0.0
      %449 = vmatpush1.msra.mxu0 0.0
      %450 = vmatprep.subr.mxu0 0.0
      %451 = vmatpush1.msra.mxu0 0.0
      %452 = vmatprep.subr.mxu0 0.0
      %453 = vmatpush1.msra.mxu0 0.0
      %454 = vmatprep.subr.mxu0 0.0
      %455 = vmatpush1.msra.mxu0 0.0
      %456 = vmatprep.subr.mxu0 0.0
      %457 = vmatpush1.msra.mxu0 %v407
      %458 = vmatprep.subr.mxu0 0.0
      %459 = vmatpush1.msra.mxu0 %v405
      %460 = vmatprep.subr.mxu0 0.0
      %461 = vmatpush1.msra.mxu0 %v403
      %462 = vmatprep.subr.mxu0 0.0
      %463 = vmatpush1.msra.mxu0 %v401
      %464 = vmatprep.subr.mxu0 0.0
      %465 = vmatpush1.msra.mxu0 %v399
      %466 = vmatprep.subr.mxu0 0.0
      %467 = vmatpush1.msra.mxu0 %v397
      %468 = vmatprep.subr.mxu0 0.0
      %469 = vmatpush1.msra.mxu0 %v395
      %470 = vmatprep.subr.mxu0 0.0
      %471 = vmatpush1.msra.mxu0 %v393
      %472 = vmatprep.subr.mxu0 0.0
      %473 = vmatpush2.msra.mxu0 0.0
      %474 = vmatprep.subr.mxu0 0.0
      %475 = vmatpush2.msra.mxu0 0.0
      %476 = vmatprep.subr.mxu0 0.0
      %477 = vmatpush2.msra.mxu0 0.0
      %478 = vmatprep.subr.mxu0 0.0
      %479 = vmatpush2.msra.mxu0 0.0
      %480 = vmatprep.subr.mxu0 0.0
      %481 = vmatpush2.msra.mxu0 0.0
      %482 = vmatprep.subr.mxu0 0.0
      %483 = vmatpush2.msra.mxu0 0.0
      %484 = vmatprep.subr.mxu0 0.0
      %485 = vmatpush2.msra.mxu0 0.0
      %486 = vmatprep.subr.mxu0 0.0
      %487 = vmatpush2.msra.mxu0 0.0
      %488 = vmatprep.subr.mxu0 0.0
      %489 = vmatpush2.msra.mxu0 0.0
      %490 = vmatprep.subr.mxu0 0.0
      %491 = vmatpush2.msra.mxu0 0.0
      %492 = vmatprep.subr.mxu0 0.0
      %493 = vmatpush2.msra.mxu0 0.0
      %494 = vmatprep.subr.mxu0 0.0
      %495 = vmatpush2.msra.mxu0 0.0
      %496 = vmatprep.subr.mxu0 0.0
      %497 = vmatpush2.msra.mxu0 0.0
      %498 = vmatprep.subr.mxu0 0.0
      %499 = vmatpush2.msra.mxu0 0.0
      %500 = vmatprep.subr.mxu0 0.0
      %501 = vmatpush2.msra.mxu0 0.0
      %502 = vmatprep.subr.mxu0 0.0
      %503 = vmatpush2.msra.mxu0 0.0
      %504 = vmatprep.mubr.f32.mxu0 0.0
      %505 = vmatmul.mubr.f32.gmra.mxu0 %v417
      %v506 = vpop.f32.mrf.mxu0
      %v507 = vadd.f32 0.0, %v506
      %v508 = vpop.f32.mrf.mxu0
      %509 = vmatprep.mubr.f32.mxu0 0.0
      %510 = vmatmul.mubr.f32.gmra.mxu0 %v420
      %v511 = vpop.f32.mrf.mxu0
      %v512 = vadd.f32 0.0, %v511
      %v513 = vpop.f32.mrf.mxu0
      %514 = vmatprep.mubr.f32.mxu0 0.0
      %515 = vmatmul.mubr.f32.gmra.mxu0 %v423
      %v516 = vpop.f32.mrf.mxu0
      %v517 = vadd.f32 0.0, %v516
      %v518 = vpop.f32.mrf.mxu0
      %519 = vmatprep.mubr.f32.mxu0 0.0
      %520 = vmatmul.mubr.f32.gmra.mxu0 %v426
      %v521 = vpop.f32.mrf.mxu0
      %v522 = vadd.f32 0.0, %v521
      %v523 = vpop.f32.mrf.mxu0
      %524 = vmatprep.mubr.f32.mxu0 0.0
      %525 = vmatmul.mubr.f32.gmra.mxu0 %v429
      %v526 = vpop.f32.mrf.mxu0
      %v527 = vadd.f32 0.0, %v526
      %v528 = vpop.f32.mrf.mxu0
      %529 = vmatprep.mubr.f32.mxu0 0.0
      %530 = vmatmul.mubr.f32.gmra.mxu0 %v432
      %v531 = vpop.f32.mrf.mxu0
      %v532 = vadd.f32 0.0, %v531
      %v533 = vpop.f32.mrf.mxu0
      %534 = vmatprep.mubr.f32.mxu0 0.0
      %535 = vmatmul.mubr.f32.gmra.mxu0 %v435
      %v536 = vpop.f32.mrf.mxu0
      %v537 = vadd.f32 0.0, %v536
      %v538 = vpop.f32.mrf.mxu0
      %539 = vmatprep.mubr.f32.mxu0 0.0
      %540 = vmatmul.mubr.f32.gmra.mxu0 %v438
      %v541 = vpop.f32.mrf.mxu0
      %v542 = vadd.f32 0.0, %v541
      %v543 = vpop.f32.mrf.mxu0
      %544 = vdwg.mxu0
      %545 = vst.msk [vmem:[%s116] sm:$0xff] %vm157, %v507
      %546 = vst.msk [vmem:[%s116 + $0x8] sm:$0xff] %vm157, %v512
      %547 = vst.msk [vmem:[%s116 + $0x10] sm:$0xff] %vm157, %v517
      %548 = vst.msk [vmem:[%s116 + $0x18] sm:$0xff] %vm157, %v522
      %549 = vst.msk [vmem:[%s116 + $0x20] sm:$0xff] %vm157, %v527
      %550 = vst.msk [vmem:[%s116 + $0x28] sm:$0xff] %vm157, %v532
      %551 = vst.msk [vmem:[%s116 + $0x30] sm:$0xff] %vm157, %v537
      %552 = vst.msk [vmem:[%s116 + $0x38] sm:$0xff] %vm157, %v542
      %553 = vrot.lane.b32.xlu0 %v125, 120
      %v554 = vpop.permute.xlu0 %553
      %555 = vrot.lane.b32.xlu0 %v126, 120
      %v556 = vpop.permute.xlu0 %555
      %557 = vrot.lane.b32.xlu0 %v127, 120
      %v558 = vpop.permute.xlu0 %557
      %559 = vrot.lane.b32.xlu0 %v128, 120
      %v560 = vpop.permute.xlu0 %559
      %561 = vrot.lane.b32.xlu0 %v129, 120
      %v562 = vpop.permute.xlu0 %561
      %563 = vrot.lane.b32.xlu0 %v130, 120
      %v564 = vpop.permute.xlu0 %563
      %565 = vrot.lane.b32.xlu0 %v131, 120
      %v566 = vpop.permute.xlu0 %565
      %567 = vrot.lane.b32.xlu0 %v132, 120
      %v568 = vpop.permute.xlu0 %567
      %569 = vrot.lane.b32.xlu0 %v117, 88
      %v570 = vpop.permute.xlu0 %569
      %571 = vrot.lane.b32.xlu0 %v118, 88
      %v572 = vpop.permute.xlu0 %571
      %573 = vrot.lane.b32.xlu0 %v119, 88
      %v574 = vpop.permute.xlu0 %573
      %575 = vrot.lane.b32.xlu0 %v120, 88
      %v576 = vpop.permute.xlu0 %575
      %577 = vrot.lane.b32.xlu0 %v121, 88
      %v578 = vpop.permute.xlu0 %577
      %579 = vrot.lane.b32.xlu0 %v122, 88
      %v580 = vpop.permute.xlu0 %579
      %581 = vrot.lane.b32.xlu0 %v123, 88
      %v582 = vpop.permute.xlu0 %581
      %583 = vrot.lane.b32.xlu0 %v124, 88
      %v584 = vpop.permute.xlu0 %583
      %v585 = vsel %vm157, %v554, 0
      %v587 = vsel %vm157, %v556, 0
      %v589 = vsel %vm157, %v558, 0
      %v591 = vsel %vm157, %v560, 0
      %v593 = vsel %vm157, %v562, 0
      %v595 = vsel %vm157, %v564, 0
      %v597 = vsel %vm157, %v566, 0
      %v599 = vsel %vm157, %v568, 0
      %v601 = vsel %vm157, %v570, 0
      %v603 = vsel %vm157, %v572, 0
      %v605 = vsel %vm157, %v574, 0
      %v607 = vsel %vm157, %v576, 0
      %v609 = vsel %vm157, %v578, 0
      %v611 = vsel %vm157, %v580, 0
      %v613 = vsel %vm157, %v582, 0
      %v615 = vsel %vm157, %v584, 0
      %617 = vmatprep.subr.mxu0 0.0
      %618 = vmatpush1.xpose.msra.mxu0 0.0
      %619 = vmatprep.subr.mxu0 0.0
      %620 = vmatpush1.xpose.msra.mxu0 0.0
      %621 = vmatprep.subr.mxu0 0.0
      %622 = vmatpush1.xpose.msra.mxu0 0.0
      %623 = vmatprep.subr.mxu0 0.0
      %624 = vmatpush1.xpose.msra.mxu0 0.0
      %625 = vmatprep.subr.mxu0 0.0
      %626 = vmatpush1.xpose.msra.mxu0 0.0
      %627 = vmatprep.subr.mxu0 0.0
      %628 = vmatpush1.xpose.msra.mxu0 0.0
      %629 = vmatprep.subr.mxu0 0.0
      %630 = vmatpush1.xpose.msra.mxu0 0.0
      %631 = vmatprep.subr.mxu0 0.0
      %632 = vmatpush1.xpose.msra.mxu0 0.0
      %633 = vmatprep.subr.mxu0 0.0
      %634 = vmatpush1.xpose.msra.mxu0 %v615
      %635 = vmatprep.subr.mxu0 0.0
      %636 = vmatpush1.xpose.msra.mxu0 %v613
      %637 = vmatprep.subr.mxu0 0.0
      %638 = vmatpush1.xpose.msra.mxu0 %v611
      %639 = vmatprep.subr.mxu0 0.0
      %640 = vmatpush1.xpose.msra.mxu0 %v609
      %641 = vmatprep.subr.mxu0 0.0
      %642 = vmatpush1.xpose.msra.mxu0 %v607
      %643 = vmatprep.subr.mxu0 0.0
      %644 = vmatpush1.xpose.msra.mxu0 %v605
      %645 = vmatprep.subr.mxu0 0.0
      %646 = vmatpush1.xpose.msra.mxu0 %v603
      %647 = vmatprep.subr.mxu0 0.0
      %648 = vmatpush1.xpose.msra.mxu0 %v601
      %649 = vmatprep.subr.mxu0 0.0
      %650 = vmatpush2.xpose.msra.mxu0 0.0
      %651 = vmatprep.subr.mxu0 0.0
      %652 = vmatpush2.xpose.msra.mxu0 0.0
      %653 = vmatprep.subr.mxu0 0.0
      %654 = vmatpush2.xpose.msra.mxu0 0.0
      %655 = vmatprep.subr.mxu0 0.0
      %656 = vmatpush2.xpose.msra.mxu0 0.0
      %657 = vmatprep.subr.mxu0 0.0
      %658 = vmatpush2.xpose.msra.mxu0 0.0
      %659 = vmatprep.subr.mxu0 0.0
      %660 = vmatpush2.xpose.msra.mxu0 0.0
      %661 = vmatprep.subr.mxu0 0.0
      %662 = vmatpush2.xpose.msra.mxu0 0.0
      %663 = vmatprep.subr.mxu0 0.0
      %664 = vmatpush2.xpose.msra.mxu0 0.0
      %665 = vmatprep.subr.mxu0 0.0
      %666 = vmatpush2.xpose.msra.mxu0 0.0
      %667 = vmatprep.subr.mxu0 0.0
      %668 = vmatpush2.xpose.msra.mxu0 0.0
      %669 = vmatprep.subr.mxu0 0.0
      %670 = vmatpush2.xpose.msra.mxu0 0.0
      %671 = vmatprep.subr.mxu0 0.0
      %672 = vmatpush2.xpose.msra.mxu0 0.0
      %673 = vmatprep.subr.mxu0 0.0
      %674 = vmatpush2.xpose.msra.mxu0 0.0
      %675 = vmatprep.subr.mxu0 0.0
      %676 = vmatpush2.xpose.msra.mxu0 0.0
      %677 = vmatprep.subr.mxu0 0.0
      %678 = vmatpush2.xpose.msra.mxu0 0.0
      %679 = vmatprep.subr.mxu0 0.0
      %680 = vmatpush2.xpose.msra.mxu0 0.0
      %681 = vmatprep.mubr.f32.mxu0 0.0
      %682 = vmatmul.mubr.f32.gmra.mxu0 %v585
      %v683 = vpop.f32.mrf.mxu0
      %v684 = vadd.f32 0.0, %v683
      %v685 = vpop.f32.mrf.mxu0
      %686 = vmatprep.mubr.f32.mxu0 0.0
      %687 = vmatmul.mubr.f32.gmra.mxu0 %v587
      %v688 = vpop.f32.mrf.mxu0
      %v689 = vadd.f32 0.0, %v688
      %v690 = vpop.f32.mrf.mxu0
      %691 = vmatprep.mubr.f32.mxu0 0.0
      %692 = vmatmul.mubr.f32.gmra.mxu0 %v589
      %v693 = vpop.f32.mrf.mxu0
      %v694 = vadd.f32 0.0, %v693
      %v695 = vpop.f32.mrf.mxu0
      %696 = vmatprep.mubr.f32.mxu0 0.0
      %697 = vmatmul.mubr.f32.gmra.mxu0 %v591
      %v698 = vpop.f32.mrf.mxu0
      %v699 = vadd.f32 0.0, %v698
      %v700 = vpop.f32.mrf.mxu0
      %701 = vmatprep.mubr.f32.mxu0 0.0
      %702 = vmatmul.mubr.f32.gmra.mxu0 %v593
      %v703 = vpop.f32.mrf.mxu0
      %v704 = vadd.f32 0.0, %v703
      %v705 = vpop.f32.mrf.mxu0
      %706 = vmatprep.mubr.f32.mxu0 0.0
      %707 = vmatmul.mubr.f32.gmra.mxu0 %v595
      %v708 = vpop.f32.mrf.mxu0
      %v709 = vadd.f32 0.0, %v708
      %v710 = vpop.f32.mrf.mxu0
      %711 = vmatprep.mubr.f32.mxu0 0.0
      %712 = vmatmul.mubr.f32.gmra.mxu0 %v597
      %v713 = vpop.f32.mrf.mxu0
      %v714 = vadd.f32 0.0, %v713
      %v715 = vpop.f32.mrf.mxu0
      %716 = vmatprep.mubr.f32.mxu0 0.0
      %717 = vmatmul.mubr.f32.gmra.mxu0 %v599
      %v718 = vpop.f32.mrf.mxu0
      %v719 = vadd.f32 0.0, %v718
      %v720 = vpop.f32.mrf.mxu0
      %721 = vdwg.mxu0
      %v722 = vsel %vm303, %v684, -inf
      %723 = vmax.xlane.f32.xlu0 %v722
      %v724 = vpop.xlane.xlu0 %723
      %v725 = vsel %vm303, %v689, -inf
      %726 = vmax.xlane.f32.xlu0 %v725
      %v727 = vpop.xlane.xlu0 %726
      %v728 = vsel %vm303, %v694, -inf
      %729 = vmax.xlane.f32.xlu0 %v728
      %v730 = vpop.xlane.xlu0 %729
      %v731 = vsel %vm303, %v699, -inf
      %732 = vmax.xlane.f32.xlu0 %v731
      %v733 = vpop.xlane.xlu0 %732
      %v734 = vsel %vm303, %v704, -inf
      %735 = vmax.xlane.f32.xlu0 %v734
      %v736 = vpop.xlane.xlu0 %735
      %v737 = vsel %vm303, %v709, -inf
      %738 = vmax.xlane.f32.xlu0 %v737
      %v739 = vpop.xlane.xlu0 %738
      %v740 = vsel %vm303, %v714, -inf
      %741 = vmax.xlane.f32.xlu0 %v740
      %v742 = vpop.xlane.xlu0 %741
      %v743 = vsel %vm303, %v719, -inf
      %744 = vmax.xlane.f32.xlu0 %v743
      %v745 = vpop.xlane.xlu0 %744
      %v746 = vsub.f32 %v684, %v724
      %v747 = vsub.f32 %v689, %v727
      %v748 = vsub.f32 %v694, %v730
      %v749 = vsub.f32 %v699, %v733
      %v750 = vsub.f32 %v704, %v736
      %v751 = vsub.f32 %v709, %v739
      %v752 = vsub.f32 %v714, %v742
      %v753 = vsub.f32 %v719, %v745
      %v754 = vmul.f32 %v746, 1.442695
      %v755 = vpow.pop %v754
      %v756 = vmul.f32 %v747, 1.442695
      %v757 = vpow.pop %v756
      %v758 = vmul.f32 %v748, 1.442695
      %v759 = vpow.pop %v758
      %v760 = vmul.f32 %v749, 1.442695
      %v761 = vpow.pop %v760
      %v762 = vmul.f32 %v750, 1.442695
      %v763 = vpow.pop %v762
      %v764 = vmul.f32 %v751, 1.442695
      %v765 = vpow.pop %v764
      %v766 = vmul.f32 %v752, 1.442695
      %v767 = vpow.pop %v766
      %v768 = vmul.f32 %v753, 1.442695
      %v769 = vpow.pop %v768
      %v770 = vsel %vm303, %v755, 0.0
      %771 = vadd.xlane.f32.xlu0 %v770
      %v772 = vpop.xlane.xlu0 %771
      %v773 = vsel %vm303, %v757, 0.0
      %774 = vadd.xlane.f32.xlu0 %v773
      %v775 = vpop.xlane.xlu0 %774
      %v776 = vsel %vm303, %v759, 0.0
      %777 = vadd.xlane.f32.xlu0 %v776
      %v778 = vpop.xlane.xlu0 %777
      %v779 = vsel %vm303, %v761, 0.0
      %780 = vadd.xlane.f32.xlu0 %v779
      %v781 = vpop.xlane.xlu0 %780
      %v782 = vsel %vm303, %v763, 0.0
      %783 = vadd.xlane.f32.xlu0 %v782
      %v784 = vpop.xlane.xlu0 %783
      %v785 = vsel %vm303, %v765, 0.0
      %786 = vadd.xlane.f32.xlu0 %v785
      %v787 = vpop.xlane.xlu0 %786
      %v788 = vsel %vm303, %v767, 0.0
      %789 = vadd.xlane.f32.xlu0 %v788
      %v790 = vpop.xlane.xlu0 %789
      %v791 = vsel %vm303, %v769, 0.0
      %792 = vadd.xlane.f32.xlu0 %v791
      %v793 = vpop.xlane.xlu0 %792
      %v794 = vrcp.pop %v772
      %v795 = vrcp.pop %v775
      %v796 = vrcp.pop %v778
      %v797 = vrcp.pop %v781
      %v798 = vrcp.pop %v784
      %v799 = vrcp.pop %v787
      %v800 = vrcp.pop %v790
      %v801 = vrcp.pop %v793
      %v802 = vmul.f32 %v755, %v794
      %v803 = vmul.f32 %v757, %v795
      %v804 = vmul.f32 %v759, %v796
      %v805 = vmul.f32 %v761, %v797
      %v806 = vmul.f32 %v763, %v798
      %v807 = vmul.f32 %v765, %v799
      %v808 = vmul.f32 %v767, %v800
      %v809 = vmul.f32 %v769, %v801
      %810 = vrot.lane.b32.xlu0 %v117, 56
      %v811 = vpop.permute.xlu0 %810
      %812 = vrot.lane.b32.xlu0 %v118, 56
      %v813 = vpop.permute.xlu0 %812
      %814 = vrot.lane.b32.xlu0 %v119, 56
      %v815 = vpop.permute.xlu0 %814
      %816 = vrot.lane.b32.xlu0 %v120, 56
      %v817 = vpop.permute.xlu0 %816
      %818 = vrot.lane.b32.xlu0 %v121, 56
      %v819 = vpop.permute.xlu0 %818
      %820 = vrot.lane.b32.xlu0 %v122, 56
      %v821 = vpop.permute.xlu0 %820
      %822 = vrot.lane.b32.xlu0 %v123, 56
      %v823 = vpop.permute.xlu0 %822
      %824 = vrot.lane.b32.xlu0 %v124, 56
      %v825 = vpop.permute.xlu0 %824
      %v835 = vsel %vm303, %v802, 0
      %v838 = vsel %vm303, %v803, 0
      %v841 = vsel %vm303, %v804, 0
      %v844 = vsel %vm303, %v805, 0
      %v847 = vsel %vm303, %v806, 0
      %v850 = vsel %vm303, %v807, 0
      %v853 = vsel %vm303, %v808, 0
      %v856 = vsel %vm303, %v809, 0
      %858 = vmatprep.subr.mxu0 0.0
      %859 = vmatpush1.msra.mxu0 0.0
      %860 = vmatprep.subr.mxu0 0.0
      %861 = vmatpush1.msra.mxu0 0.0
      %862 = vmatprep.subr.mxu0 0.0
      %863 = vmatpush1.msra.mxu0 0.0
      %864 = vmatprep.subr.mxu0 0.0
      %865 = vmatpush1.msra.mxu0 0.0
      %866 = vmatprep.subr.mxu0 0.0
      %867 = vmatpush1.msra.mxu0 0.0
      %868 = vmatprep.subr.mxu0 0.0
      %869 = vmatpush1.msra.mxu0 0.0
      %870 = vmatprep.subr.mxu0 0.0
      %871 = vmatpush1.msra.mxu0 0.0
      %872 = vmatprep.subr.mxu0 0.0
      %873 = vmatpush1.msra.mxu0 0.0
      %874 = vmatprep.subr.mxu0 0.0
      %875 = vmatpush1.msra.mxu0 %v825
      %876 = vmatprep.subr.mxu0 0.0
      %877 = vmatpush1.msra.mxu0 %v823
      %878 = vmatprep.subr.mxu0 0.0
      %879 = vmatpush1.msra.mxu0 %v821
      %880 = vmatprep.subr.mxu0 0.0
      %881 = vmatpush1.msra.mxu0 %v819
      %882 = vmatprep.subr.mxu0 0.0
      %883 = vmatpush1.msra.mxu0 %v817
      %884 = vmatprep.subr.mxu0 0.0
      %885 = vmatpush1.msra.mxu0 %v815
      %886 = vmatprep.subr.mxu0 0.0
      %887 = vmatpush1.msra.mxu0 %v813
      %888 = vmatprep.subr.mxu0 0.0
      %889 = vmatpush1.msra.mxu0 %v811
      %890 = vmatprep.subr.mxu0 0.0
      %891 = vmatpush2.msra.mxu0 0.0
      %892 = vmatprep.subr.mxu0 0.0
      %893 = vmatpush2.msra.mxu0 0.0
      %894 = vmatprep.subr.mxu0 0.0
      %895 = vmatpush2.msra.mxu0 0.0
      %896 = vmatprep.subr.mxu0 0.0
      %897 = vmatpush2.msra.mxu0 0.0
      %898 = vmatprep.subr.mxu0 0.0
      %899 = vmatpush2.msra.mxu0 0.0
      %900 = vmatprep.subr.mxu0 0.0
      %901 = vmatpush2.msra.mxu0 0.0
      %902 = vmatprep.subr.mxu0 0.0
      %903 = vmatpush2.msra.mxu0 0.0
      %904 = vmatprep.subr.mxu0 0.0
      %905 = vmatpush2.msra.mxu0 0.0
      %906 = vmatprep.subr.mxu0 0.0
      %907 = vmatpush2.msra.mxu0 0.0
      %908 = vmatprep.subr.mxu0 0.0
      %909 = vmatpush2.msra.mxu0 0.0
      %910 = vmatprep.subr.mxu0 0.0
      %911 = vmatpush2.msra.mxu0 0.0
      %912 = vmatprep.subr.mxu0 0.0
      %913 = vmatpush2.msra.mxu0 0.0
      %914 = vmatprep.subr.mxu0 0.0
      %915 = vmatpush2.msra.mxu0 0.0
      %916 = vmatprep.subr.mxu0 0.0
      %917 = vmatpush2.msra.mxu0 0.0
      %918 = vmatprep.subr.mxu0 0.0
      %919 = vmatpush2.msra.mxu0 0.0
      %920 = vmatprep.subr.mxu0 0.0
      %921 = vmatpush2.msra.mxu0 0.0
      %922 = vmatprep.mubr.f32.mxu0 0.0
      %923 = vmatmul.mubr.f32.gmra.mxu0 %v835
      %v924 = vpop.f32.mrf.mxu0
      %v925 = vadd.f32 0.0, %v924
      %v926 = vpop.f32.mrf.mxu0
      %927 = vmatprep.mubr.f32.mxu0 0.0
      %928 = vmatmul.mubr.f32.gmra.mxu0 %v838
      %v929 = vpop.f32.mrf.mxu0
      %v930 = vadd.f32 0.0, %v929
      %v931 = vpop.f32.mrf.mxu0
      %932 = vmatprep.mubr.f32.mxu0 0.0
      %933 = vmatmul.mubr.f32.gmra.mxu0 %v841
      %v934 = vpop.f32.mrf.mxu0
      %v935 = vadd.f32 0.0, %v934
      %v936 = vpop.f32.mrf.mxu0
      %937 = vmatprep.mubr.f32.mxu0 0.0
      %938 = vmatmul.mubr.f32.gmra.mxu0 %v844
      %v939 = vpop.f32.mrf.mxu0
      %v940 = vadd.f32 0.0, %v939
      %v941 = vpop.f32.mrf.mxu0
      %942 = vmatprep.mubr.f32.mxu0 0.0
      %943 = vmatmul.mubr.f32.gmra.mxu0 %v847
      %v944 = vpop.f32.mrf.mxu0
      %v945 = vadd.f32 0.0, %v944
      %v946 = vpop.f32.mrf.mxu0
      %947 = vmatprep.mubr.f32.mxu0 0.0
      %948 = vmatmul.mubr.f32.gmra.mxu0 %v850
      %v949 = vpop.f32.mrf.mxu0
      %v950 = vadd.f32 0.0, %v949
      %v951 = vpop.f32.mrf.mxu0
      %952 = vmatprep.mubr.f32.mxu0 0.0
      %953 = vmatmul.mubr.f32.gmra.mxu0 %v853
      %v954 = vpop.f32.mrf.mxu0
      %v955 = vadd.f32 0.0, %v954
      %v956 = vpop.f32.mrf.mxu0
      %957 = vmatprep.mubr.f32.mxu0 0.0
      %958 = vmatmul.mubr.f32.gmra.mxu0 %v856
      %v959 = vpop.f32.mrf.mxu0
      %v960 = vadd.f32 0.0, %v959
      %v961 = vpop.f32.mrf.mxu0
      %962 = vdwg.mxu0
      %971 = vrot.lane.b32.xlu0 %v925, 8
      %v972 = vpop.permute.xlu0 %971
      %973 = vrot.lane.b32.xlu0 %v930, 8
      %v974 = vpop.permute.xlu0 %973
      %975 = vrot.lane.b32.xlu0 %v935, 8
      %v976 = vpop.permute.xlu0 %975
      %977 = vrot.lane.b32.xlu0 %v940, 8
      %v978 = vpop.permute.xlu0 %977
      %979 = vrot.lane.b32.xlu0 %v945, 8
      %v980 = vpop.permute.xlu0 %979
      %981 = vrot.lane.b32.xlu0 %v950, 8
      %v982 = vpop.permute.xlu0 %981
      %983 = vrot.lane.b32.xlu0 %v955, 8
      %v984 = vpop.permute.xlu0 %983
      %985 = vrot.lane.b32.xlu0 %v960, 8
      %v986 = vpop.permute.xlu0 %985
      %vm995 = vcmask 130112
      %996 = vst.msk [vmem:[%s116] sm:$0xff] %vm995, %v972
      %997 = vst.msk [vmem:[%s116 + $0x8] sm:$0xff] %vm995, %v974
      %998 = vst.msk [vmem:[%s116 + $0x10] sm:$0xff] %vm995, %v976
      %999 = vst.msk [vmem:[%s116 + $0x18] sm:$0xff] %vm995, %v978
      %1000 = vst.msk [vmem:[%s116 + $0x20] sm:$0xff] %vm995, %v980
      %1001 = vst.msk [vmem:[%s116 + $0x28] sm:$0xff] %vm995, %v982
      %1002 = vst.msk [vmem:[%s116 + $0x30] sm:$0xff] %vm995, %v984
      %1003 = vst.msk [vmem:[%s116 + $0x38] sm:$0xff] %vm995, %v986
      %1004 = vrot.lane.b32.xlu0 %v125, 112
      %v1005 = vpop.permute.xlu0 %1004
      %1006 = vrot.lane.b32.xlu0 %v126, 112
      %v1007 = vpop.permute.xlu0 %1006
      %1008 = vrot.lane.b32.xlu0 %v127, 112
      %v1009 = vpop.permute.xlu0 %1008
      %1010 = vrot.lane.b32.xlu0 %v128, 112
      %v1011 = vpop.permute.xlu0 %1010
      %1012 = vrot.lane.b32.xlu0 %v129, 112
      %v1013 = vpop.permute.xlu0 %1012
      %1014 = vrot.lane.b32.xlu0 %v130, 112
      %v1015 = vpop.permute.xlu0 %1014
      %1016 = vrot.lane.b32.xlu0 %v131, 112
      %v1017 = vpop.permute.xlu0 %1016
      %1018 = vrot.lane.b32.xlu0 %v132, 112
      %v1019 = vpop.permute.xlu0 %1018
      %1020 = vrot.lane.b32.xlu0 %v117, 80
      %v1021 = vpop.permute.xlu0 %1020
      %1022 = vrot.lane.b32.xlu0 %v118, 80
      %v1023 = vpop.permute.xlu0 %1022
      %1024 = vrot.lane.b32.xlu0 %v119, 80
      %v1025 = vpop.permute.xlu0 %1024
      %1026 = vrot.lane.b32.xlu0 %v120, 80
      %v1027 = vpop.permute.xlu0 %1026
      %1028 = vrot.lane.b32.xlu0 %v121, 80
      %v1029 = vpop.permute.xlu0 %1028
      %1030 = vrot.lane.b32.xlu0 %v122, 80
      %v1031 = vpop.permute.xlu0 %1030
      %1032 = vrot.lane.b32.xlu0 %v123, 80
      %v1033 = vpop.permute.xlu0 %1032
      %1034 = vrot.lane.b32.xlu0 %v124, 80
      %v1035 = vpop.permute.xlu0 %1034
      %v1036 = vsel %vm157, %v1005, 0
      %v1038 = vsel %vm157, %v1007, 0
      %v1040 = vsel %vm157, %v1009, 0
      %v1042 = vsel %vm157, %v1011, 0
      %v1044 = vsel %vm157, %v1013, 0
      %v1046 = vsel %vm157, %v1015, 0
      %v1048 = vsel %vm157, %v1017, 0
      %v1050 = vsel %vm157, %v1019, 0
      %v1052 = vsel %vm157, %v1021, 0
      %v1054 = vsel %vm157, %v1023, 0
      %v1056 = vsel %vm157, %v1025, 0
      %v1058 = vsel %vm157, %v1027, 0
      %v1060 = vsel %vm157, %v1029, 0
      %v1062 = vsel %vm157, %v1031, 0
      %v1064 = vsel %vm157, %v1033, 0
      %v1066 = vsel %vm157, %v1035, 0
      %1068 = vmatprep.subr.mxu0 0.0
      %1069 = vmatpush1.xpose.msra.mxu0 0.0
      %1070 = vmatprep.subr.mxu0 0.0
      %1071 = vmatpush1.xpose.msra.mxu0 0.0
      %1072 = vmatprep.subr.mxu0 0.0
      %1073 = vmatpush1.xpose.msra.mxu0 0.0
      %1074 = vmatprep.subr.mxu0 0.0
      %1075 = vmatpush1.xpose.msra.mxu0 0.0
      %1076 = vmatprep.subr.mxu0 0.0
      %1077 = vmatpush1.xpose.msra.mxu0 0.0
      %1078 = vmatprep.subr.mxu0 0.0
      %1079 = vmatpush1.xpose.msra.mxu0 0.0
      %1080 = vmatprep.subr.mxu0 0.0
      %1081 = vmatpush1.xpose.msra.mxu0 0.0
      %1082 = vmatprep.subr.mxu0 0.0
      %1083 = vmatpush1.xpose.msra.mxu0 0.0
      %1084 = vmatprep.subr.mxu0 0.0
      %1085 = vmatpush1.xpose.msra.mxu0 %v1066
      %1086 = vmatprep.subr.mxu0 0.0
      %1087 = vmatpush1.xpose.msra.mxu0 %v1064
      %1088 = vmatprep.subr.mxu0 0.0
      %1089 = vmatpush1.xpose.msra.mxu0 %v1062
      %1090 = vmatprep.subr.mxu0 0.0
      %1091 = vmatpush1.xpose.msra.mxu0 %v1060
      %1092 = vmatprep.subr.mxu0 0.0
      %1093 = vmatpush1.xpose.msra.mxu0 %v1058
      %1094 = vmatprep.subr.mxu0 0.0
      %1095 = vmatpush1.xpose.msra.mxu0 %v1056
      %1096 = vmatprep.subr.mxu0 0.0
      %1097 = vmatpush1.xpose.msra.mxu0 %v1054
      %1098 = vmatprep.subr.mxu0 0.0
      %1099 = vmatpush1.xpose.msra.mxu0 %v1052
      %1100 = vmatprep.subr.mxu0 0.0
      %1101 = vmatpush2.xpose.msra.mxu0 0.0
      %1102 = vmatprep.subr.mxu0 0.0
      %1103 = vmatpush2.xpose.msra.mxu0 0.0
      %1104 = vmatprep.subr.mxu0 0.0
      %1105 = vmatpush2.xpose.msra.mxu0 0.0
      %1106 = vmatprep.subr.mxu0 0.0
      %1107 = vmatpush2.xpose.msra.mxu0 0.0
      %1108 = vmatprep.subr.mxu0 0.0
      %1109 = vmatpush2.xpose.msra.mxu0 0.0
      %1110 = vmatprep.subr.mxu0 0.0
      %1111 = vmatpush2.xpose.msra.mxu0 0.0
      %1112 = vmatprep.subr.mxu0 0.0
      %1113 = vmatpush2.xpose.msra.mxu0 0.0
      %1114 = vmatprep.subr.mxu0 0.0
      %1115 = vmatpush2.xpose.msra.mxu0 0.0
      %1116 = vmatprep.subr.mxu0 0.0
      %1117 = vmatpush2.xpose.msra.mxu0 0.0
      %1118 = vmatprep.subr.mxu0 0.0
      %1119 = vmatpush2.xpose.msra.mxu0 0.0
      %1120 = vmatprep.subr.mxu0 0.0
      %1121 = vmatpush2.xpose.msra.mxu0 0.0
      %1122 = vmatprep.subr.mxu0 0.0
      %1123 = vmatpush2.xpose.msra.mxu0 0.0
      %1124 = vmatprep.subr.mxu0 0.0
      %1125 = vmatpush2.xpose.msra.mxu0 0.0
      %1126 = vmatprep.subr.mxu0 0.0
      %1127 = vmatpush2.xpose.msra.mxu0 0.0
      %1128 = vmatprep.subr.mxu0 0.0
      %1129 = vmatpush2.xpose.msra.mxu0 0.0
      %1130 = vmatprep.subr.mxu0 0.0
      %1131 = vmatpush2.xpose.msra.mxu0 0.0
      %1132 = vmatprep.mubr.f32.mxu0 0.0
      %1133 = vmatmul.mubr.f32.gmra.mxu0 %v1036
      %v1134 = vpop.f32.mrf.mxu0
      %v1135 = vadd.f32 0.0, %v1134
      %v1136 = vpop.f32.mrf.mxu0
      %1137 = vmatprep.mubr.f32.mxu0 0.0
      %1138 = vmatmul.mubr.f32.gmra.mxu0 %v1038
      %v1139 = vpop.f32.mrf.mxu0
      %v1140 = vadd.f32 0.0, %v1139
      %v1141 = vpop.f32.mrf.mxu0
      %1142 = vmatprep.mubr.f32.mxu0 0.0
      %1143 = vmatmul.mubr.f32.gmra.mxu0 %v1040
      %v1144 = vpop.f32.mrf.mxu0
      %v1145 = vadd.f32 0.0, %v1144
      %v1146 = vpop.f32.mrf.mxu0
      %1147 = vmatprep.mubr.f32.mxu0 0.0
      %1148 = vmatmul.mubr.f32.gmra.mxu0 %v1042
      %v1149 = vpop.f32.mrf.mxu0
      %v1150 = vadd.f32 0.0, %v1149
      %v1151 = vpop.f32.mrf.mxu0
      %1152 = vmatprep.mubr.f32.mxu0 0.0
      %1153 = vmatmul.mubr.f32.gmra.mxu0 %v1044
      %v1154 = vpop.f32.mrf.mxu0
      %v1155 = vadd.f32 0.0, %v1154
      %v1156 = vpop.f32.mrf.mxu0
      %1157 = vmatprep.mubr.f32.mxu0 0.0
      %1158 = vmatmul.mubr.f32.gmra.mxu0 %v1046
      %v1159 = vpop.f32.mrf.mxu0
      %v1160 = vadd.f32 0.0, %v1159
      %v1161 = vpop.f32.mrf.mxu0
      %1162 = vmatprep.mubr.f32.mxu0 0.0
      %1163 = vmatmul.mubr.f32.gmra.mxu0 %v1048
      %v1164 = vpop.f32.mrf.mxu0
      %v1165 = vadd.f32 0.0, %v1164
      %v1166 = vpop.f32.mrf.mxu0
      %1167 = vmatprep.mubr.f32.mxu0 0.0
      %1168 = vmatmul.mubr.f32.gmra.mxu0 %v1050
      %v1169 = vpop.f32.mrf.mxu0
      %v1170 = vadd.f32 0.0, %v1169
      %v1171 = vpop.f32.mrf.mxu0
      %1172 = vdwg.mxu0
      %v1173 = vsel %vm303, %v1135, -inf
      %1174 = vmax.xlane.f32.xlu0 %v1173
      %v1175 = vpop.xlane.xlu0 %1174
      %v1176 = vsel %vm303, %v1140, -inf
      %1177 = vmax.xlane.f32.xlu0 %v1176
      %v1178 = vpop.xlane.xlu0 %1177
      %v1179 = vsel %vm303, %v1145, -inf
      %1180 = vmax.xlane.f32.xlu0 %v1179
      %v1181 = vpop.xlane.xlu0 %1180
      %v1182 = vsel %vm303, %v1150, -inf
      %1183 = vmax.xlane.f32.xlu0 %v1182
      %v1184 = vpop.xlane.xlu0 %1183
      %v1185 = vsel %vm303, %v1155, -inf
      %1186 = vmax.xlane.f32.xlu0 %v1185
      %v1187 = vpop.xlane.xlu0 %1186
      %v1188 = vsel %vm303, %v1160, -inf
      %1189 = vmax.xlane.f32.xlu0 %v1188
      %v1190 = vpop.xlane.xlu0 %1189
      %v1191 = vsel %vm303, %v1165, -inf
      %1192 = vmax.xlane.f32.xlu0 %v1191
      %v1193 = vpop.xlane.xlu0 %1192
      %v1194 = vsel %vm303, %v1170, -inf
      %1195 = vmax.xlane.f32.xlu0 %v1194
      %v1196 = vpop.xlane.xlu0 %1195
      %v1197 = vsub.f32 %v1135, %v1175
      %v1198 = vsub.f32 %v1140, %v1178
      %v1199 = vsub.f32 %v1145, %v1181
      %v1200 = vsub.f32 %v1150, %v1184
      %v1201 = vsub.f32 %v1155, %v1187
      %v1202 = vsub.f32 %v1160, %v1190
      %v1203 = vsub.f32 %v1165, %v1193
      %v1204 = vsub.f32 %v1170, %v1196
      %v1205 = vmul.f32 %v1197, 1.442695
      %v1206 = vpow.pop %v1205
      %v1207 = vmul.f32 %v1198, 1.442695
      %v1208 = vpow.pop %v1207
      %v1209 = vmul.f32 %v1199, 1.442695
      %v1210 = vpow.pop %v1209
      %v1211 = vmul.f32 %v1200, 1.442695
      %v1212 = vpow.pop %v1211
      %v1213 = vmul.f32 %v1201, 1.442695
      %v1214 = vpow.pop %v1213
      %v1215 = vmul.f32 %v1202, 1.442695
      %v1216 = vpow.pop %v1215
      %v1217 = vmul.f32 %v1203, 1.442695
      %v1218 = vpow.pop %v1217
      %v1219 = vmul.f32 %v1204, 1.442695
      %v1220 = vpow.pop %v1219
      %v1221 = vsel %vm303, %v1206, 0.0
      %1222 = vadd.xlane.f32.xlu0 %v1221
      %v1223 = vpop.xlane.xlu0 %1222
      %v1224 = vsel %vm303, %v1208, 0.0
      %1225 = vadd.xlane.f32.xlu0 %v1224
      %v1226 = vpop.xlane.xlu0 %1225
      %v1227 = vsel %vm303, %v1210, 0.0
      %1228 = vadd.xlane.f32.xlu0 %v1227
      %v1229 = vpop.xlane.xlu0 %1228
      %v1230 = vsel %vm303, %v1212, 0.0
      %1231 = vadd.xlane.f32.xlu0 %v1230
      %v1232 = vpop.xlane.xlu0 %1231
      %v1233 = vsel %vm303, %v1214, 0.0
      %1234 = vadd.xlane.f32.xlu0 %v1233
      %v1235 = vpop.xlane.xlu0 %1234
      %v1236 = vsel %vm303, %v1216, 0.0
      %1237 = vadd.xlane.f32.xlu0 %v1236
      %v1238 = vpop.xlane.xlu0 %1237
      %v1239 = vsel %vm303, %v1218, 0.0
      %1240 = vadd.xlane.f32.xlu0 %v1239
      %v1241 = vpop.xlane.xlu0 %1240
      %v1242 = vsel %vm303, %v1220, 0.0
      %1243 = vadd.xlane.f32.xlu0 %v1242
      %v1244 = vpop.xlane.xlu0 %1243
      %v1245 = vrcp.pop %v1223
      %v1246 = vrcp.pop %v1226
      %v1247 = vrcp.pop %v1229
      %v1248 = vrcp.pop %v1232
      %v1249 = vrcp.pop %v1235
      %v1250 = vrcp.pop %v1238
      %v1251 = vrcp.pop %v1241
      %v1252 = vrcp.pop %v1244
      %v1253 = vmul.f32 %v1206, %v1245
      %v1254 = vmul.f32 %v1208, %v1246
      %v1255 = vmul.f32 %v1210, %v1247
      %v1256 = vmul.f32 %v1212, %v1248
      %v1257 = vmul.f32 %v1214, %v1249
      %v1258 = vmul.f32 %v1216, %v1250
      %v1259 = vmul.f32 %v1218, %v1251
      %v1260 = vmul.f32 %v1220, %v1252
      %1261 = vrot.lane.b32.xlu0 %v117, 48
      %v1262 = vpop.permute.xlu0 %1261
      %1263 = vrot.lane.b32.xlu0 %v118, 48
      %v1264 = vpop.permute.xlu0 %1263
      %1265 = vrot.lane.b32.xlu0 %v119, 48
      %v1266 = vpop.permute.xlu0 %1265
      %1267 = vrot.lane.b32.xlu0 %v120, 48
      %v1268 = vpop.permute.xlu0 %1267
      %1269 = vrot.lane.b32.xlu0 %v121, 48
      %v1270 = vpop.permute.xlu0 %1269
      %1271 = vrot.lane.b32.xlu0 %v122, 48
      %v1272 = vpop.permute.xlu0 %1271
      %1273 = vrot.lane.b32.xlu0 %v123, 48
      %v1274 = vpop.permute.xlu0 %1273
      %1275 = vrot.lane.b32.xlu0 %v124, 48
      %v1276 = vpop.permute.xlu0 %1275
      %v1286 = vsel %vm303, %v1253, 0
      %v1289 = vsel %vm303, %v1254, 0
      %v1292 = vsel %vm303, %v1255, 0
      %v1295 = vsel %vm303, %v1256, 0
      %v1298 = vsel %vm303, %v1257, 0
      %v1301 = vsel %vm303, %v1258, 0
      %v1304 = vsel %vm303, %v1259, 0
      %v1307 = vsel %vm303, %v1260, 0
      %1309 = vmatprep.subr.mxu0 0.0
      %1310 = vmatpush1.msra.mxu0 0.0
      %1311 = vmatprep.subr.mxu0 0.0
      %1312 = vmatpush1.msra.mxu0 0.0
      %1313 = vmatprep.subr.mxu0 0.0
      %1314 = vmatpush1.msra.mxu0 0.0
      %1315 = vmatprep.subr.mxu0 0.0
      %1316 = vmatpush1.msra.mxu0 0.0
      %1317 = vmatprep.subr.mxu0 0.0
      %1318 = vmatpush1.msra.mxu0 0.0
      %1319 = vmatprep.subr.mxu0 0.0
      %1320 = vmatpush1.msra.mxu0 0.0
      %1321 = vmatprep.subr.mxu0 0.0
      %1322 = vmatpush1.msra.mxu0 0.0
      %1323 = vmatprep.subr.mxu0 0.0
      %1324 = vmatpush1.msra.mxu0 0.0
      %1325 = vmatprep.subr.mxu0 0.0
      %1326 = vmatpush1.msra.mxu0 %v1276
      %1327 = vmatprep.subr.mxu0 0.0
      %1328 = vmatpush1.msra.mxu0 %v1274
      %1329 = vmatprep.subr.mxu0 0.0
      %1330 = vmatpush1.msra.mxu0 %v1272
      %1331 = vmatprep.subr.mxu0 0.0
      %1332 = vmatpush1.msra.mxu0 %v1270
      %1333 = vmatprep.subr.mxu0 0.0
      %1334 = vmatpush1.msra.mxu0 %v1268
      %1335 = vmatprep.subr.mxu0 0.0
      %1336 = vmatpush1.msra.mxu0 %v1266
      %1337 = vmatprep.subr.mxu0 0.0
      %1338 = vmatpush1.msra.mxu0 %v1264
      %1339 = vmatprep.subr.mxu0 0.0
      %1340 = vmatpush1.msra.mxu0 %v1262
      %1341 = vmatprep.subr.mxu0 0.0
      %1342 = vmatpush2.msra.mxu0 0.0
      %1343 = vmatprep.subr.mxu0 0.0
      %1344 = vmatpush2.msra.mxu0 0.0
      %1345 = vmatprep.subr.mxu0 0.0
      %1346 = vmatpush2.msra.mxu0 0.0
      %1347 = vmatprep.subr.mxu0 0.0
      %1348 = vmatpush2.msra.mxu0 0.0
      %1349 = vmatprep.subr.mxu0 0.0
      %1350 = vmatpush2.msra.mxu0 0.0
      %1351 = vmatprep.subr.mxu0 0.0
      %1352 = vmatpush2.msra.mxu0 0.0
      %1353 = vmatprep.subr.mxu0 0.0
      %1354 = vmatpush2.msra.mxu0 0.0
      %1355 = vmatprep.subr.mxu0 0.0
      %1356 = vmatpush2.msra.mxu0 0.0
      %1357 = vmatprep.subr.mxu0 0.0
      %1358 = vmatpush2.msra.mxu0 0.0
      %1359 = vmatprep.subr.mxu0 0.0
      %1360 = vmatpush2.msra.mxu0 0.0
      %1361 = vmatprep.subr.mxu0 0.0
      %1362 = vmatpush2.msra.mxu0 0.0
      %1363 = vmatprep.subr.mxu0 0.0
      %1364 = vmatpush2.msra.mxu0 0.0
      %1365 = vmatprep.subr.mxu0 0.0
      %1366 = vmatpush2.msra.mxu0 0.0
      %1367 = vmatprep.subr.mxu0 0.0
      %1368 = vmatpush2.msra.mxu0 0.0
      %1369 = vmatprep.subr.mxu0 0.0
      %1370 = vmatpush2.msra.mxu0 0.0
      %1371 = vmatprep.subr.mxu0 0.0
      %1372 = vmatpush2.msra.mxu0 0.0
      %1373 = vmatprep.mubr.f32.mxu0 0.0
      %1374 = vmatmul.mubr.f32.gmra.mxu0 %v1286
      %v1375 = vpop.f32.mrf.mxu0
      %v1376 = vadd.f32 0.0, %v1375
      %v1377 = vpop.f32.mrf.mxu0
      %1378 = vmatprep.mubr.f32.mxu0 0.0
      %1379 = vmatmul.mubr.f32.gmra.mxu0 %v1289
      %v1380 = vpop.f32.mrf.mxu0
      %v1381 = vadd.f32 0.0, %v1380
      %v1382 = vpop.f32.mrf.mxu0
      %1383 = vmatprep.mubr.f32.mxu0 0.0
      %1384 = vmatmul.mubr.f32.gmra.mxu0 %v1292
      %v1385 = vpop.f32.mrf.mxu0
      %v1386 = vadd.f32 0.0, %v1385
      %v1387 = vpop.f32.mrf.mxu0
      %1388 = vmatprep.mubr.f32.mxu0 0.0
      %1389 = vmatmul.mubr.f32.gmra.mxu0 %v1295
      %v1390 = vpop.f32.mrf.mxu0
      %v1391 = vadd.f32 0.0, %v1390
      %v1392 = vpop.f32.mrf.mxu0
      %1393 = vmatprep.mubr.f32.mxu0 0.0
      %1394 = vmatmul.mubr.f32.gmra.mxu0 %v1298
      %v1395 = vpop.f32.mrf.mxu0
      %v1396 = vadd.f32 0.0, %v1395
      %v1397 = vpop.f32.mrf.mxu0
      %1398 = vmatprep.mubr.f32.mxu0 0.0
      %1399 = vmatmul.mubr.f32.gmra.mxu0 %v1301
      %v1400 = vpop.f32.mrf.mxu0
      %v1401 = vadd.f32 0.0, %v1400
      %v1402 = vpop.f32.mrf.mxu0
      %1403 = vmatprep.mubr.f32.mxu0 0.0
      %1404 = vmatmul.mubr.f32.gmra.mxu0 %v1304
      %v1405 = vpop.f32.mrf.mxu0
      %v1406 = vadd.f32 0.0, %v1405
      %v1407 = vpop.f32.mrf.mxu0
      %1408 = vmatprep.mubr.f32.mxu0 0.0
      %1409 = vmatmul.mubr.f32.gmra.mxu0 %v1307
      %v1410 = vpop.f32.mrf.mxu0
      %v1411 = vadd.f32 0.0, %v1410
      %v1412 = vpop.f32.mrf.mxu0
      %1413 = vdwg.mxu0
      %1422 = vrot.lane.b32.xlu0 %v1376, 16
      %v1423 = vpop.permute.xlu0 %1422
      %1424 = vrot.lane.b32.xlu0 %v1381, 16
      %v1425 = vpop.permute.xlu0 %1424
      %1426 = vrot.lane.b32.xlu0 %v1386, 16
      %v1427 = vpop.permute.xlu0 %1426
      %1428 = vrot.lane.b32.xlu0 %v1391, 16
      %v1429 = vpop.permute.xlu0 %1428
      %1430 = vrot.lane.b32.xlu0 %v1396, 16
      %v1431 = vpop.permute.xlu0 %1430
      %1432 = vrot.lane.b32.xlu0 %v1401, 16
      %v1433 = vpop.permute.xlu0 %1432
      %1434 = vrot.lane.b32.xlu0 %v1406, 16
      %v1435 = vpop.permute.xlu0 %1434
      %1436 = vrot.lane.b32.xlu0 %v1411, 16
      %v1437 = vpop.permute.xlu0 %1436
      %vm1446 = vcmask 195712
      %1447 = vst.msk [vmem:[%s116] sm:$0xff] %vm1446, %v1423
      %1448 = vst.msk [vmem:[%s116 + $0x8] sm:$0xff] %vm1446, %v1425
      %1449 = vst.msk [vmem:[%s116 + $0x10] sm:$0xff] %vm1446, %v1427
      %1450 = vst.msk [vmem:[%s116 + $0x18] sm:$0xff] %vm1446, %v1429
      %1451 = vst.msk [vmem:[%s116 + $0x20] sm:$0xff] %vm1446, %v1431
      %1452 = vst.msk [vmem:[%s116 + $0x28] sm:$0xff] %vm1446, %v1433
      %1453 = vst.msk [vmem:[%s116 + $0x30] sm:$0xff] %vm1446, %v1435
      %1454 = vst.msk [vmem:[%s116 + $0x38] sm:$0xff] %vm1446, %v1437
      %1455 = vrot.lane.b32.xlu0 %v125, 104
      %v1456 = vpop.permute.xlu0 %1455
      %1457 = vrot.lane.b32.xlu0 %v126, 104
      %v1458 = vpop.permute.xlu0 %1457
      %1459 = vrot.lane.b32.xlu0 %v127, 104
      %v1460 = vpop.permute.xlu0 %1459
      %1461 = vrot.lane.b32.xlu0 %v128, 104
      %v1462 = vpop.permute.xlu0 %1461
      %1463 = vrot.lane.b32.xlu0 %v129, 104
      %v1464 = vpop.permute.xlu0 %1463
      %1465 = vrot.lane.b32.xlu0 %v130, 104
      %v1466 = vpop.permute.xlu0 %1465
      %1467 = vrot.lane.b32.xlu0 %v131, 104
      %v1468 = vpop.permute.xlu0 %1467
      %1469 = vrot.lane.b32.xlu0 %v132, 104
      %v1470 = vpop.permute.xlu0 %1469
      %1471 = vrot.lane.b32.xlu0 %v117, 72
      %v1472 = vpop.permute.xlu0 %1471
      %1473 = vrot.lane.b32.xlu0 %v118, 72
      %v1474 = vpop.permute.xlu0 %1473
      %1475 = vrot.lane.b32.xlu0 %v119, 72
      %v1476 = vpop.permute.xlu0 %1475
      %1477 = vrot.lane.b32.xlu0 %v120, 72
      %v1478 = vpop.permute.xlu0 %1477
      %1479 = vrot.lane.b32.xlu0 %v121, 72
      %v1480 = vpop.permute.xlu0 %1479
      %1481 = vrot.lane.b32.xlu0 %v122, 72
      %v1482 = vpop.permute.xlu0 %1481
      %1483 = vrot.lane.b32.xlu0 %v123, 72
      %v1484 = vpop.permute.xlu0 %1483
      %1485 = vrot.lane.b32.xlu0 %v124, 72
      %v1486 = vpop.permute.xlu0 %1485
      %v1487 = vsel %vm157, %v1456, 0
      %v1489 = vsel %vm157, %v1458, 0
      %v1491 = vsel %vm157, %v1460, 0
      %v1493 = vsel %vm157, %v1462, 0
      %v1495 = vsel %vm157, %v1464, 0
      %v1497 = vsel %vm157, %v1466, 0
      %v1499 = vsel %vm157, %v1468, 0
      %v1501 = vsel %vm157, %v1470, 0
      %v1503 = vsel %vm157, %v1472, 0
      %v1505 = vsel %vm157, %v1474, 0
      %v1507 = vsel %vm157, %v1476, 0
      %v1509 = vsel %vm157, %v1478, 0
      %v1511 = vsel %vm157, %v1480, 0
      %v1513 = vsel %vm157, %v1482, 0
      %v1515 = vsel %vm157, %v1484, 0
      %v1517 = vsel %vm157, %v1486, 0
      %1519 = vmatprep.subr.mxu0 0.0
      %1520 = vmatpush1.xpose.msra.mxu0 0.0
      %1521 = vmatprep.subr.mxu0 0.0
      %1522 = vmatpush1.xpose.msra.mxu0 0.0
      %1523 = vmatprep.subr.mxu0 0.0
      %1524 = vmatpush1.xpose.msra.mxu0 0.0
      %1525 = vmatprep.subr.mxu0 0.0
      %1526 = vmatpush1.xpose.msra.mxu0 0.0
      %1527 = vmatprep.subr.mxu0 0.0
      %1528 = vmatpush1.xpose.msra.mxu0 0.0
      %1529 = vmatprep.subr.mxu0 0.0
      %1530 = vmatpush1.xpose.msra.mxu0 0.0
      %1531 = vmatprep.subr.mxu0 0.0
      %1532 = vmatpush1.xpose.msra.mxu0 0.0
      %1533 = vmatprep.subr.mxu0 0.0
      %1534 = vmatpush1.xpose.msra.mxu0 0.0
      %1535 = vmatprep.subr.mxu0 0.0
      %1536 = vmatpush1.xpose.msra.mxu0 %v1517
      %1537 = vmatprep.subr.mxu0 0.0
      %1538 = vmatpush1.xpose.msra.mxu0 %v1515
      %1539 = vmatprep.subr.mxu0 0.0
      %1540 = vmatpush1.xpose.msra.mxu0 %v1513
      %1541 = vmatprep.subr.mxu0 0.0
      %1542 = vmatpush1.xpose.msra.mxu0 %v1511
      %1543 = vmatprep.subr.mxu0 0.0
      %1544 = vmatpush1.xpose.msra.mxu0 %v1509
      %1545 = vmatprep.subr.mxu0 0.0
      %1546 = vmatpush1.xpose.msra.mxu0 %v1507
      %1547 = vmatprep.subr.mxu0 0.0
      %1548 = vmatpush1.xpose.msra.mxu0 %v1505
      %1549 = vmatprep.subr.mxu0 0.0
      %1550 = vmatpush1.xpose.msra.mxu0 %v1503
      %1551 = vmatprep.subr.mxu0 0.0
      %1552 = vmatpush2.xpose.msra.mxu0 0.0
      %1553 = vmatprep.subr.mxu0 0.0
      %1554 = vmatpush2.xpose.msra.mxu0 0.0
      %1555 = vmatprep.subr.mxu0 0.0
      %1556 = vmatpush2.xpose.msra.mxu0 0.0
      %1557 = vmatprep.subr.mxu0 0.0
      %1558 = vmatpush2.xpose.msra.mxu0 0.0
      %1559 = vmatprep.subr.mxu0 0.0
      %1560 = vmatpush2.xpose.msra.mxu0 0.0
      %1561 = vmatprep.subr.mxu0 0.0
      %1562 = vmatpush2.xpose.msra.mxu0 0.0
      %1563 = vmatprep.subr.mxu0 0.0
      %1564 = vmatpush2.xpose.msra.mxu0 0.0
      %1565 = vmatprep.subr.mxu0 0.0
      %1566 = vmatpush2.xpose.msra.mxu0 0.0
      %1567 = vmatprep.subr.mxu0 0.0
      %1568 = vmatpush2.xpose.msra.mxu0 0.0
      %1569 = vmatprep.subr.mxu0 0.0
      %1570 = vmatpush2.xpose.msra.mxu0 0.0
      %1571 = vmatprep.subr.mxu0 0.0
      %1572 = vmatpush2.xpose.msra.mxu0 0.0
      %1573 = vmatprep.subr.mxu0 0.0
      %1574 = vmatpush2.xpose.msra.mxu0 0.0
      %1575 = vmatprep.subr.mxu0 0.0
      %1576 = vmatpush2.xpose.msra.mxu0 0.0
      %1577 = vmatprep.subr.mxu0 0.0
      %1578 = vmatpush2.xpose.msra.mxu0 0.0
      %1579 = vmatprep.subr.mxu0 0.0
      %1580 = vmatpush2.xpose.msra.mxu0 0.0
      %1581 = vmatprep.subr.mxu0 0.0
      %1582 = vmatpush2.xpose.msra.mxu0 0.0
      %1583 = vmatprep.mubr.f32.mxu0 0.0
      %1584 = vmatmul.mubr.f32.gmra.mxu0 %v1487
      %v1585 = vpop.f32.mrf.mxu0
      %v1586 = vadd.f32 0.0, %v1585
      %v1587 = vpop.f32.mrf.mxu0
      %1588 = vmatprep.mubr.f32.mxu0 0.0
      %1589 = vmatmul.mubr.f32.gmra.mxu0 %v1489
      %v1590 = vpop.f32.mrf.mxu0
      %v1591 = vadd.f32 0.0, %v1590
      %v1592 = vpop.f32.mrf.mxu0
      %1593 = vmatprep.mubr.f32.mxu0 0.0
      %1594 = vmatmul.mubr.f32.gmra.mxu0 %v1491
      %v1595 = vpop.f32.mrf.mxu0
      %v1596 = vadd.f32 0.0, %v1595
      %v1597 = vpop.f32.mrf.mxu0
      %1598 = vmatprep.mubr.f32.mxu0 0.0
      %1599 = vmatmul.mubr.f32.gmra.mxu0 %v1493
      %v1600 = vpop.f32.mrf.mxu0
      %v1601 = vadd.f32 0.0, %v1600
      %v1602 = vpop.f32.mrf.mxu0
      %1603 = vmatprep.mubr.f32.mxu0 0.0
      %1604 = vmatmul.mubr.f32.gmra.mxu0 %v1495
      %v1605 = vpop.f32.mrf.mxu0
      %v1606 = vadd.f32 0.0, %v1605
      %v1607 = vpop.f32.mrf.mxu0
      %1608 = vmatprep.mubr.f32.mxu0 0.0
      %1609 = vmatmul.mubr.f32.gmra.mxu0 %v1497
      %v1610 = vpop.f32.mrf.mxu0
      %v1611 = vadd.f32 0.0, %v1610
      %v1612 = vpop.f32.mrf.mxu0
      %1613 = vmatprep.mubr.f32.mxu0 0.0
      %1614 = vmatmul.mubr.f32.gmra.mxu0 %v1499
      %v1615 = vpop.f32.mrf.mxu0
      %v1616 = vadd.f32 0.0, %v1615
      %v1617 = vpop.f32.mrf.mxu0
      %1618 = vmatprep.mubr.f32.mxu0 0.0
      %1619 = vmatmul.mubr.f32.gmra.mxu0 %v1501
      %v1620 = vpop.f32.mrf.mxu0
      %v1621 = vadd.f32 0.0, %v1620
      %v1622 = vpop.f32.mrf.mxu0
      %1623 = vdwg.mxu0
      %v1624 = vsel %vm303, %v1586, -inf
      %1625 = vmax.xlane.f32.xlu0 %v1624
      %v1626 = vpop.xlane.xlu0 %1625
      %v1627 = vsel %vm303, %v1591, -inf
      %1628 = vmax.xlane.f32.xlu0 %v1627
      %v1629 = vpop.xlane.xlu0 %1628
      %v1630 = vsel %vm303, %v1596, -inf
      %1631 = vmax.xlane.f32.xlu0 %v1630
      %v1632 = vpop.xlane.xlu0 %1631
      %v1633 = vsel %vm303, %v1601, -inf
      %1634 = vmax.xlane.f32.xlu0 %v1633
      %v1635 = vpop.xlane.xlu0 %1634
      %v1636 = vsel %vm303, %v1606, -inf
      %1637 = vmax.xlane.f32.xlu0 %v1636
      %v1638 = vpop.xlane.xlu0 %1637
      %v1639 = vsel %vm303, %v1611, -inf
      %1640 = vmax.xlane.f32.xlu0 %v1639
      %v1641 = vpop.xlane.xlu0 %1640
      %v1642 = vsel %vm303, %v1616, -inf
      %1643 = vmax.xlane.f32.xlu0 %v1642
      %v1644 = vpop.xlane.xlu0 %1643
      %v1645 = vsel %vm303, %v1621, -inf
      %1646 = vmax.xlane.f32.xlu0 %v1645
      %v1647 = vpop.xlane.xlu0 %1646
      %v1648 = vsub.f32 %v1586, %v1626
      %v1649 = vsub.f32 %v1591, %v1629
      %v1650 = vsub.f32 %v1596, %v1632
      %v1651 = vsub.f32 %v1601, %v1635
      %v1652 = vsub.f32 %v1606, %v1638
      %v1653 = vsub.f32 %v1611, %v1641
      %v1654 = vsub.f32 %v1616, %v1644
      %v1655 = vsub.f32 %v1621, %v1647
      %v1656 = vmul.f32 %v1648, 1.442695
      %v1657 = vpow.pop %v1656
      %v1658 = vmul.f32 %v1649, 1.442695
      %v1659 = vpow.pop %v1658
      %v1660 = vmul.f32 %v1650, 1.442695
      %v1661 = vpow.pop %v1660
      %v1662 = vmul.f32 %v1651, 1.442695
      %v1663 = vpow.pop %v1662
      %v1664 = vmul.f32 %v1652, 1.442695
      %v1665 = vpow.pop %v1664
      %v1666 = vmul.f32 %v1653, 1.442695
      %v1667 = vpow.pop %v1666
      %v1668 = vmul.f32 %v1654, 1.442695
      %v1669 = vpow.pop %v1668
      %v1670 = vmul.f32 %v1655, 1.442695
      %v1671 = vpow.pop %v1670
      %v1672 = vsel %vm303, %v1657, 0.0
      %1673 = vadd.xlane.f32.xlu0 %v1672
      %v1674 = vpop.xlane.xlu0 %1673
      %v1675 = vsel %vm303, %v1659, 0.0
      %1676 = vadd.xlane.f32.xlu0 %v1675
      %v1677 = vpop.xlane.xlu0 %1676
      %v1678 = vsel %vm303, %v1661, 0.0
      %1679 = vadd.xlane.f32.xlu0 %v1678
      %v1680 = vpop.xlane.xlu0 %1679
      %v1681 = vsel %vm303, %v1663, 0.0
      %1682 = vadd.xlane.f32.xlu0 %v1681
      %v1683 = vpop.xlane.xlu0 %1682
      %v1684 = vsel %vm303, %v1665, 0.0
      %1685 = vadd.xlane.f32.xlu0 %v1684
      %v1686 = vpop.xlane.xlu0 %1685
      %v1687 = vsel %vm303, %v1667, 0.0
      %1688 = vadd.xlane.f32.xlu0 %v1687
      %v1689 = vpop.xlane.xlu0 %1688
      %v1690 = vsel %vm303, %v1669, 0.0
      %1691 = vadd.xlane.f32.xlu0 %v1690
      %v1692 = vpop.xlane.xlu0 %1691
      %v1693 = vsel %vm303, %v1671, 0.0
      %1694 = vadd.xlane.f32.xlu0 %v1693
      %v1695 = vpop.xlane.xlu0 %1694
      %v1696 = vrcp.pop %v1674
      %v1697 = vrcp.pop %v1677
      %v1698 = vrcp.pop %v1680
      %v1699 = vrcp.pop %v1683
      %v1700 = vrcp.pop %v1686
      %v1701 = vrcp.pop %v1689
      %v1702 = vrcp.pop %v1692
      %v1703 = vrcp.pop %v1695
      %v1704 = vmul.f32 %v1657, %v1696
      %v1705 = vmul.f32 %v1659, %v1697
      %v1706 = vmul.f32 %v1661, %v1698
      %v1707 = vmul.f32 %v1663, %v1699
      %v1708 = vmul.f32 %v1665, %v1700
      %v1709 = vmul.f32 %v1667, %v1701
      %v1710 = vmul.f32 %v1669, %v1702
      %v1711 = vmul.f32 %v1671, %v1703
      %1712 = vrot.lane.b32.xlu0 %v117, 40
      %v1713 = vpop.permute.xlu0 %1712
      %1714 = vrot.lane.b32.xlu0 %v118, 40
      %v1715 = vpop.permute.xlu0 %1714
      %1716 = vrot.lane.b32.xlu0 %v119, 40
      %v1717 = vpop.permute.xlu0 %1716
      %1718 = vrot.lane.b32.xlu0 %v120, 40
      %v1719 = vpop.permute.xlu0 %1718
      %1720 = vrot.lane.b32.xlu0 %v121, 40
      %v1721 = vpop.permute.xlu0 %1720
      %1722 = vrot.lane.b32.xlu0 %v122, 40
      %v1723 = vpop.permute.xlu0 %1722
      %1724 = vrot.lane.b32.xlu0 %v123, 40
      %v1725 = vpop.permute.xlu0 %1724
      %1726 = vrot.lane.b32.xlu0 %v124, 40
      %v1727 = vpop.permute.xlu0 %1726
      %v1737 = vsel %vm303, %v1704, 0
      %v1740 = vsel %vm303, %v1705, 0
      %v1743 = vsel %vm303, %v1706, 0
      %v1746 = vsel %vm303, %v1707, 0
      %v1749 = vsel %vm303, %v1708, 0
      %v1752 = vsel %vm303, %v1709, 0
      %v1755 = vsel %vm303, %v1710, 0
      %v1758 = vsel %vm303, %v1711, 0
      %1760 = vmatprep.subr.mxu0 0.0
      %1761 = vmatpush1.msra.mxu0 0.0
      %1762 = vmatprep.subr.mxu0 0.0
      %1763 = vmatpush1.msra.mxu0 0.0
      %1764 = vmatprep.subr.mxu0 0.0
      %1765 = vmatpush1.msra.mxu0 0.0
      %1766 = vmatprep.subr.mxu0 0.0
      %1767 = vmatpush1.msra.mxu0 0.0
      %1768 = vmatprep.subr.mxu0 0.0
      %1769 = vmatpush1.msra.mxu0 0.0
      %1770 = vmatprep.subr.mxu0 0.0
      %1771 = vmatpush1.msra.mxu0 0.0
      %1772 = vmatprep.subr.mxu0 0.0
      %1773 = vmatpush1.msra.mxu0 0.0
      %1774 = vmatprep.subr.mxu0 0.0
      %1775 = vmatpush1.msra.mxu0 0.0
      %1776 = vmatprep.subr.mxu0 0.0
      %1777 = vmatpush1.msra.mxu0 %v1727
      %1778 = vmatprep.subr.mxu0 0.0
      %1779 = vmatpush1.msra.mxu0 %v1725
      %1780 = vmatprep.subr.mxu0 0.0
      %1781 = vmatpush1.msra.mxu0 %v1723
      %1782 = vmatprep.subr.mxu0 0.0
      %1783 = vmatpush1.msra.mxu0 %v1721
      %1784 = vmatprep.subr.mxu0 0.0
      %1785 = vmatpush1.msra.mxu0 %v1719
      %1786 = vmatprep.subr.mxu0 0.0
      %1787 = vmatpush1.msra.mxu0 %v1717
      %1788 = vmatprep.subr.mxu0 0.0
      %1789 = vmatpush1.msra.mxu0 %v1715
      %1790 = vmatprep.subr.mxu0 0.0
      %1791 = vmatpush1.msra.mxu0 %v1713
      %1792 = vmatprep.subr.mxu0 0.0
      %1793 = vmatpush2.msra.mxu0 0.0
      %1794 = vmatprep.subr.mxu0 0.0
      %1795 = vmatpush2.msra.mxu0 0.0
      %1796 = vmatprep.subr.mxu0 0.0
      %1797 = vmatpush2.msra.mxu0 0.0
      %1798 = vmatprep.subr.mxu0 0.0
      %1799 = vmatpush2.msra.mxu0 0.0
      %1800 = vmatprep.subr.mxu0 0.0
      %1801 = vmatpush2.msra.mxu0 0.0
      %1802 = vmatprep.subr.mxu0 0.0
      %1803 = vmatpush2.msra.mxu0 0.0
      %1804 = vmatprep.subr.mxu0 0.0
      %1805 = vmatpush2.msra.mxu0 0.0
      %1806 = vmatprep.subr.mxu0 0.0
      %1807 = vmatpush2.msra.mxu0 0.0
      %1808 = vmatprep.subr.mxu0 0.0
      %1809 = vmatpush2.msra.mxu0 0.0
      %1810 = vmatprep.subr.mxu0 0.0
      %1811 = vmatpush2.msra.mxu0 0.0
      %1812 = vmatprep.subr.mxu0 0.0
      %1813 = vmatpush2.msra.mxu0 0.0
      %1814 = vmatprep.subr.mxu0 0.0
      %1815 = vmatpush2.msra.mxu0 0.0
      %1816 = vmatprep.subr.mxu0 0.0
      %1817 = vmatpush2.msra.mxu0 0.0
      %1818 = vmatprep.subr.mxu0 0.0
      %1819 = vmatpush2.msra.mxu0 0.0
      %1820 = vmatprep.subr.mxu0 0.0
      %1821 = vmatpush2.msra.mxu0 0.0
      %1822 = vmatprep.subr.mxu0 0.0
      %1823 = vmatpush2.msra.mxu0 0.0
      %1824 = vmatprep.mubr.f32.mxu0 0.0
      %1825 = vmatmul.mubr.f32.gmra.mxu0 %v1737
      %v1826 = vpop.f32.mrf.mxu0
      %v1827 = vadd.f32 0.0, %v1826
      %v1828 = vpop.f32.mrf.mxu0
      %1829 = vmatprep.mubr.f32.mxu0 0.0
      %1830 = vmatmul.mubr.f32.gmra.mxu0 %v1740
      %v1831 = vpop.f32.mrf.mxu0
      %v1832 = vadd.f32 0.0, %v1831
      %v1833 = vpop.f32.mrf.mxu0
      %1834 = vmatprep.mubr.f32.mxu0 0.0
      %1835 = vmatmul.mubr.f32.gmra.mxu0 %v1743
      %v1836 = vpop.f32.mrf.mxu0
      %v1837 = vadd.f32 0.0, %v1836
      %v1838 = vpop.f32.mrf.mxu0
      %1839 = vmatprep.mubr.f32.mxu0 0.0
      %1840 = vmatmul.mubr.f32.gmra.mxu0 %v1746
      %v1841 = vpop.f32.mrf.mxu0
      %v1842 = vadd.f32 0.0, %v1841
      %v1843 = vpop.f32.mrf.mxu0
      %1844 = vmatprep.mubr.f32.mxu0 0.0
      %1845 = vmatmul.mubr.f32.gmra.mxu0 %v1749
      %v1846 = vpop.f32.mrf.mxu0
      %v1847 = vadd.f32 0.0, %v1846
      %v1848 = vpop.f32.mrf.mxu0
      %1849 = vmatprep.mubr.f32.mxu0 0.0
      %1850 = vmatmul.mubr.f32.gmra.mxu0 %v1752
      %v1851 = vpop.f32.mrf.mxu0
      %v1852 = vadd.f32 0.0, %v1851
      %v1853 = vpop.f32.mrf.mxu0
      %1854 = vmatprep.mubr.f32.mxu0 0.0
      %1855 = vmatmul.mubr.f32.gmra.mxu0 %v1755
      %v1856 = vpop.f32.mrf.mxu0
      %v1857 = vadd.f32 0.0, %v1856
      %v1858 = vpop.f32.mrf.mxu0
      %1859 = vmatprep.mubr.f32.mxu0 0.0
      %1860 = vmatmul.mubr.f32.gmra.mxu0 %v1758
      %v1861 = vpop.f32.mrf.mxu0
      %v1862 = vadd.f32 0.0, %v1861
      %v1863 = vpop.f32.mrf.mxu0
      %1864 = vdwg.mxu0
      %1873 = vrot.lane.b32.xlu0 %v1827, 24
      %v1874 = vpop.permute.xlu0 %1873
      %1875 = vrot.lane.b32.xlu0 %v1832, 24
      %v1876 = vpop.permute.xlu0 %1875
      %1877 = vrot.lane.b32.xlu0 %v1837, 24
      %v1878 = vpop.permute.xlu0 %1877
      %1879 = vrot.lane.b32.xlu0 %v1842, 24
      %v1880 = vpop.permute.xlu0 %1879
      %1881 = vrot.lane.b32.xlu0 %v1847, 24
      %v1882 = vpop.permute.xlu0 %1881
      %1883 = vrot.lane.b32.xlu0 %v1852, 24
      %v1884 = vpop.permute.xlu0 %1883
      %1885 = vrot.lane.b32.xlu0 %v1857, 24
      %v1886 = vpop.permute.xlu0 %1885
      %1887 = vrot.lane.b32.xlu0 %v1862, 24
      %v1888 = vpop.permute.xlu0 %1887
      %vm1897 = vcmask 261312
      %1898 = vst.msk [vmem:[%s116] sm:$0xff] %vm1897, %v1874
      %1899 = vst.msk [vmem:[%s116 + $0x8] sm:$0xff] %vm1897, %v1876
      %1900 = vst.msk [vmem:[%s116 + $0x10] sm:$0xff] %vm1897, %v1878
      %1901 = vst.msk [vmem:[%s116 + $0x18] sm:$0xff] %vm1897, %v1880
      %1902 = vst.msk [vmem:[%s116 + $0x20] sm:$0xff] %vm1897, %v1882
      %1903 = vst.msk [vmem:[%s116 + $0x28] sm:$0xff] %vm1897, %v1884
      %1904 = vst.msk [vmem:[%s116 + $0x30] sm:$0xff] %vm1897, %v1886
      %1905 = vst.msk [vmem:[%s116 + $0x38] sm:$0xff] %vm1897, %v1888
      %p1906 = scmp.lt.s32.totalorder %s12, 1
      %s1907 = scalar_select %p1906, %s12, 1
      %s1908 = smul.addr %s1907, 8
      %s1909 = smul.addr %s1908, 8
      %s1910 = scalar_lea.vmem %s1, %s1909
      // Predicated region
      $region25: #{qkv_attention_forward.4} parent=23 // pred_check
        %p1911 = pneg %p56
      $region26: #{qkv_attention_forward.4} parent=23 // pred_check_branch
        %1913 = sbr.rel (%p1911) target = $region28
      $region27: #{qkv_attention_forward.4} parent=23 // pred_region
        _
      $region28: #{qkv_attention_forward.4} parent=23 // pred_fallthru
        _
    $region24: #{qkv_attention_forward.4} parent=5 // pred_fallthru
      _
    %p1914 = scmp.le.s32.totalorder 2, %s7
    // Predicated region
    $region29: #{qkv_attention_forward.4} parent=5 // pred_check
      %p1915 = pneg %p1914
    $region30: #{qkv_attention_forward.4} parent=5 // pred_check_branch
      %1917 = sbr.rel (%p1915) target = $region32
    $region31: #{qkv_attention_forward.4} parent=5 // pred_region
      %s1918 = ssub.s32 %s7, 2
      // Predicated region
      $region33: #{qkv_attention_forward.4} parent=31 // pred_check
        %p1919 = pneg %p62
      $region34: #{qkv_attention_forward.4} parent=31 // pred_check_branch
        %1921 = sbr.rel (%p1919) target = $region36
      $region35: #{qkv_attention_forward.4} parent=31 // pred_region
        %p1922 = scmp.lt.s32.totalorder %s13, 1
        %s1923 = scalar_select %p1922, %s13, 1
        %s1924 = smul.addr %s1923, 8
        %s1925 = smul.addr %s1924, 8
        %s1926 = scalar_lea.vmem %s1, %s1925
      $region36: #{qkv_attention_forward.4} parent=31 // pred_fallthru
        _
    $region32: #{qkv_attention_forward.4} parent=5 // pred_fallthru
      _
  $region6: #{qkv_attention_forward.4} parent=0 // loop_footer
    %s11 = sadd.s32 1, %s7
  $region7: #{qkv_attention_forward.4} parent=0 // loop_footer_branch
    %6 = sbr.rel target = $region3
  $region8: #{qkv_attention_forward.4} parent=0 // loop_exit
    _

</llo_original>
